<compile_context>
chip_gen: v7x
topology: tpu7x:2x2x1
jax: 0.10.0
libtpu: 0.0.40
codegen_flags: <defaults>
</compile_context>

<pallas_src>
import functools

import jax
import jax.numpy as jnp
from jax import lax
from jax.experimental import pallas as pl
from jax.experimental.pallas import tpu as pltpu


def _down_kernel(x_ref, w1_ref, s1_ref, b1_ref, w2_ref, s2_ref, b2_ref, o_ref,
                 pad1_ref, im1_ref, pad2_ref, im2_ref, *, Hp, Wp, Cin, C):
    """One image per grid step.

    x_ref : (1, Hp, 2, Wp, 2*Cin)  raw NHWC image, 2x2 pool window split over dims 2/4
    w1_ref: (9*Cin, C) bf16        conv1 weights, rows ordered (dy, dx, cin)
    w2_ref: (9*C,   C) bf16        conv2 weights
    s*_ref/b*_ref: (1, C) f32      folded BN scale / shift (incl. conv bias)
    o_ref : (1, Hp, Wp, C)         NHWC output tile
    pad*_ref: zero-halo activation scratch; im*_ref: im2col scratch (bf16 MXU inputs)
    """
    M = Hp * Wp

    # ---- 1) 2x2 max-pool: four contiguous taps + elementwise maximum (f32) ----------
    x00 = x_ref[0, :, 0, :, 0:Cin]
    x01 = x_ref[0, :, 0, :, Cin:2 * Cin]
    x10 = x_ref[0, :, 1, :, 0:Cin]
    x11 = x_ref[0, :, 1, :, Cin:2 * Cin]
    pooled = jnp.maximum(jnp.maximum(x00, x01), jnp.maximum(x10, x11))   # (Hp, Wp, Cin)

    # ---- 2) conv1 + BN + ReLU : im2col -> single (M, 9*Cin) @ (9*Cin, C) MXU matmul --
    pad1_ref[...] = jnp.zeros_like(pad1_ref)           # zero halo = padding=1
    pad1_ref[1:1 + Hp, 1:1 + Wp, :] = pooled
    for k in range(9):                                  # 9 static taps, whole-tile each
        dy, dx = k // 3, k % 3
        patch = pad1_ref[dy:dy + Hp, dx:dx + Wp, :]     # (Hp, Wp, Cin)
        im1_ref[:, k * Cin:(k + 1) * Cin] = patch.reshape(M, Cin).astype(im1_ref.dtype)
    acc1 = jnp.dot(im1_ref[...], w1_ref[...], preferred_element_type=jnp.float32)
    y1 = jnp.maximum(acc1 * s1_ref[...] + b1_ref[...], 0.0)              # (M, C) f32

    # ---- 3) conv2 + BN + ReLU (intermediate never leaves VMEM) ----------------------
    pad2_ref[...] = jnp.zeros_like(pad2_ref)
    pad2_ref[1:1 + Hp, 1:1 + Wp, :] = y1.reshape(Hp, Wp, C)
    for k in range(9):
        dy, dx = k // 3, k % 3
        patch = pad2_ref[dy:dy + Hp, dx:dx + Wp, :]     # (Hp, Wp, C)
        im2_ref[:, k * C:(k + 1) * C] = patch.reshape(M, C).astype(im2_ref.dtype)
    acc2 = jnp.dot(im2_ref[...], w2_ref[...], preferred_element_type=jnp.float32)
    y2 = jnp.maximum(acc2 * s2_ref[...] + b2_ref[...], 0.0)              # (M, C) f32

    o_ref[0] = y2.reshape(Hp, Wp, C).astype(o_ref.dtype)


def down_forward(x_nchw, kparams):
    """Forward pass of `down` (maxpool2 + double_conv). NCHW in / NCHW out."""
    w1, s1, b1, w2, s2, b2 = kparams
    N, Cin, H, W = x_nchw.shape
    assert H % 2 == 0 and W % 2 == 0
    Hp, Wp = H // 2, W // 2
    C = w1.shape[-1]

    x_nhwc = jnp.transpose(x_nchw, (0, 2, 3, 1))                 # NCHW -> NHWC
    xr = x_nhwc.reshape(N, Hp, 2, Wp, 2 * Cin)                   # free reshape: groups
                                                                 # each 2x2 pool window
    kernel = functools.partial(_down_kernel, Hp=Hp, Wp=Wp, Cin=Cin, C=C)
    out = pl.pallas_call(
        kernel,
        out_shape=jax.ShapeDtypeStruct((N, Hp, Wp, C), jnp.float32),
        grid=(N,),
        in_specs=[
            pl.BlockSpec((1, Hp, 2, Wp, 2 * Cin), lambda n: (n, 0, 0, 0, 0)),
            pl.BlockSpec((9 * Cin, C), lambda n: (0, 0)),   # weights stay VMEM-resident
            pl.BlockSpec((1, C), lambda n: (0, 0)),
            pl.BlockSpec((1, C), lambda n: (0, 0)),
            pl.BlockSpec((9 * C, C), lambda n: (0, 0)),
            pl.BlockSpec((1, C), lambda n: (0, 0)),
            pl.BlockSpec((1, C), lambda n: (0, 0)),
        ],
        out_specs=pl.BlockSpec((1, Hp, Wp, C), lambda n: (n, 0, 0, 0)),
        scratch_shapes=[
            pltpu.VMEM((Hp + 2, Wp + 2, Cin), jnp.float32),      # pooled input + halo
            pltpu.VMEM((Hp * Wp, 9 * Cin), jnp.bfloat16),        # im2col (conv1)
            pltpu.VMEM((Hp + 2, Wp + 2, C), jnp.float32),        # conv1 act + halo
            pltpu.VMEM((Hp * Wp, 9 * C), jnp.bfloat16),          # im2col (conv2)
        ],
        compiler_params=pltpu.CompilerParams(dimension_semantics=("parallel",)),
    )(xr, w1, s1, b1, w2, s2, b2)

    return jnp.transpose(out, (0, 3, 1, 2))                      # NHWC -> NCHW


# ----------------------------- parameters / reference ---------------------------------

def _fold_bn(conv_bias, gamma, beta, running_mean, running_var, eps=1e-5):
    """Fold conv bias + eval-mode BatchNorm into per-channel (scale, shift)."""
    scale = gamma / jnp.sqrt(running_var + eps)
    shift = (conv_bias - running_mean) * scale + beta
    return scale, shift


def init_down_params(key, in_ch, out_ch):
    """Deterministic synthetic params in PyTorch layout (conv weight OIHW)."""
    ks = jax.random.split(key, 12)

    def conv_init(kw, kb, cin, cout):
        fan_in = cin * 9
        w = jax.random.normal(kw, (cout, cin, 3, 3), jnp.float32) / jnp.sqrt(fan_in)
        b = 0.05 * jax.random.normal(kb, (cout,), jnp.float32)
        return w, b

    def bn_init(kg, kb, km, kv, c):
        gamma = 1.0 + 0.1 * jax.random.normal(kg, (c,), jnp.float32)
        beta = 0.1 * jax.random.normal(kb, (c,), jnp.float32)
        mean = 0.1 * jax.random.normal(km, (c,), jnp.float32)
        var = 1.0 + 0.2 * jax.random.uniform(kv, (c,), jnp.float32)
        return gamma, beta, mean, var

    w1, b1 = conv_init(ks[0], ks[1], in_ch, out_ch)
    g1, be1, m1, v1 = bn_init(ks[2], ks[3], ks[4], ks[5], out_ch)
    w2, b2 = conv_init(ks[6], ks[7], out_ch, out_ch)
    g2, be2, m2, v2 = bn_init(ks[8], ks[9], ks[10], ks[11], out_ch)
    return ((w1, b1, g1, be1, m1, v1), (w2, b2, g2, be2, m2, v2))


def prepare_kernel_params(raw):
    """OIHW f32 -> (9*Cin, Cout) bf16 matmul weights + folded f32 BN scale/shift."""
    def prep(w_oihw, b, g, be, m, v):
        cout, cin = w_oihw.shape[0], w_oihw.shape[1]
        w_hwio = jnp.transpose(w_oihw, (2, 3, 1, 0))             # (3,3,Cin,Cout)
        w_mat = w_hwio.reshape(9 * cin, cout).astype(jnp.bfloat16)
        s, sh = _fold_bn(b, g, be, m, v)
        return (w_mat,
                s.reshape(1, cout).astype(jnp.float32),
                sh.reshape(1, cout).astype(jnp.float32))

    (w1m, s1, sh1) = prep(*raw[0])
    (w2m, s2, sh2) = prep(*raw[1])
    return (w1m, s1, sh1, w2m, s2, sh2)


def _reference_forward(x_nchw, raw, match_kernel_dtypes):
    """Pure-JAX reference (maxpool + lax.conv).  If match_kernel_dtypes, the conv
    inputs/weights are rounded to bf16 like the kernel's MXU path (f32 accumulation)."""
    x = jnp.transpose(x_nchw, (0, 2, 3, 1))
    N, H, W, Cin = x.shape
    x = x.reshape(N, H // 2, 2, W // 2, 2, Cin).max(axis=(2, 4))     # MaxPool2d(2)
    for (w_oihw, b, g, be, m, v) in raw:
        scale, shift = _fold_bn(b, g, be, m, v)
        w_hwio = jnp.transpose(w_oihw, (2, 3, 1, 0))
        xin, win = x, w_hwio
        if match_kernel_dtypes:
            xin = xin.astype(jnp.bfloat16).astype(jnp.float32)
            win = win.astype(jnp.bfloat16).astype(jnp.float32)
        y = lax.conv_general_dilated(xin, win, (1, 1), "SAME",
                                     dimension_numbers=("NHWC", "HWIO", "NHWC"))
        x = jnp.maximum(y * scale + shift, 0.0)
    return jnp.transpose(x, (0, 3, 1, 2))


if __name__ == "__main__":
    in_ch, out_ch = 4, 8
    N, H, W = 2, 16, 16

    key = jax.random.PRNGKey(0)
    kx, kp = jax.random.split(key)
    x = jax.random.normal(kx, (N, in_ch, H, W), jnp.float32)         # NCHW like PyTorch
    raw_params = init_down_params(kp, in_ch, out_ch)
    kparams = prepare_kernel_params(raw_params)

    out = jax.block_until_ready(down_forward(x, kparams))
    assert out.shape == (N, out_ch, H // 2, W // 2), out.shape

    # Tight check vs a reference using the same bf16-input / f32-accumulate policy.
    ref_bf16 = _reference_forward(x, raw_params, match_kernel_dtypes=True)
    assert jnp.allclose(out, ref_bf16, rtol=5e-3, atol=5e-3), \
        float(jnp.max(jnp.abs(out - ref_bf16)))

    # Loose sanity check vs the full-f32 (PyTorch-exact) reference (bf16 MXU inputs).
    ref_f32 = _reference_forward(x, raw_params, match_kernel_dtypes=False)
    assert jnp.allclose(out, ref_f32, rtol=1e-1, atol=1e-1), \
        float(jnp.max(jnp.abs(out - ref_f32)))

    print("KERNEL_OK")
</pallas_src>

<mosaic_0001>
module attributes {stable_mosaic.version = 11 : i64} {
  func.func @_down_kernel(%arg0: i32, %arg1: memref<1x8x2x8x8xf32, #tpu.memory_space<vmem>>, %arg2: memref<36x8xbf16, #tpu.memory_space<vmem>>, %arg3: memref<1x8xf32, #tpu.memory_space<vmem>>, %arg4: memref<1x8xf32, #tpu.memory_space<vmem>>, %arg5: memref<72x8xbf16, #tpu.memory_space<vmem>>, %arg6: memref<1x8xf32, #tpu.memory_space<vmem>>, %arg7: memref<1x8xf32, #tpu.memory_space<vmem>>, %arg8: memref<1x8x8x8xf32, #tpu.memory_space<vmem>>, %arg9: memref<10x10x4xf32, #tpu.memory_space<vmem>>, %arg10: memref<64x36xbf16, #tpu.memory_space<vmem>>, %arg11: memref<10x10x8xf32, #tpu.memory_space<vmem>>, %arg12: memref<64x72xbf16, #tpu.memory_space<vmem>>) attributes {dimension_semantics = [#tpu.dimension_semantics<parallel>], iteration_bounds = array<i64: 2>, scalar_prefetch = 0 : i64, scratch_operands = 4 : i64, tpu.core_type = #tpu.core_type<tc>, window_params = [{transform_indices = @transform_0, window_bounds = array<i64: 1, 8, 2, 8, 8>}, {pipeline_mode = #tpu.pipeline_mode<synchronous>, transform_indices = @transform_1, window_bounds = array<i64: 36, 8>}, {pipeline_mode = #tpu.pipeline_mode<synchronous>, transform_indices = @transform_2, window_bounds = array<i64: 1, 8>}, {pipeline_mode = #tpu.pipeline_mode<synchronous>, transform_indices = @transform_3, window_bounds = array<i64: 1, 8>}, {pipeline_mode = #tpu.pipeline_mode<synchronous>, transform_indices = @transform_4, window_bounds = array<i64: 72, 8>}, {pipeline_mode = #tpu.pipeline_mode<synchronous>, transform_indices = @transform_5, window_bounds = array<i64: 1, 8>}, {pipeline_mode = #tpu.pipeline_mode<synchronous>, transform_indices = @transform_6, window_bounds = array<i64: 1, 8>}, {transform_indices = @transform_7, window_bounds = array<i64: 1, 8, 8, 8>}]} {
    %c0 = arith.constant 0 : index
    %c0_0 = arith.constant 0 : index
    %c0_1 = arith.constant 0 : index
    %c0_2 = arith.constant 0 : index
    %c0_3 = arith.constant 0 : index
    %0 = vector.load %arg1[%c0, %c0_0, %c0_1, %c0_2, %c0_3] : memref<1x8x2x8x8xf32, #tpu.memory_space<vmem>>, vector<1x8x1x8x4xf32>
    %1 = vector.shape_cast %0 : vector<1x8x1x8x4xf32> to vector<8x8x4xf32>
    %c0_4 = arith.constant 0 : index
    %c0_5 = arith.constant 0 : index
    %c0_6 = arith.constant 0 : index
    %c0_7 = arith.constant 0 : index
    %c4 = arith.constant 4 : index
    %2 = vector.load %arg1[%c0_4, %c0_5, %c0_6, %c0_7, %c4] : memref<1x8x2x8x8xf32, #tpu.memory_space<vmem>>, vector<1x8x1x8x4xf32>
    %3 = vector.shape_cast %2 : vector<1x8x1x8x4xf32> to vector<8x8x4xf32>
    %c0_8 = arith.constant 0 : index
    %c0_9 = arith.constant 0 : index
    %c1 = arith.constant 1 : index
    %c0_10 = arith.constant 0 : index
    %c0_11 = arith.constant 0 : index
    %4 = vector.load %arg1[%c0_8, %c0_9, %c1, %c0_10, %c0_11] : memref<1x8x2x8x8xf32, #tpu.memory_space<vmem>>, vector<1x8x1x8x4xf32>
    %5 = vector.shape_cast %4 : vector<1x8x1x8x4xf32> to vector<8x8x4xf32>
    %c0_12 = arith.constant 0 : index
    %c0_13 = arith.constant 0 : index
    %c1_14 = arith.constant 1 : index
    %c0_15 = arith.constant 0 : index
    %c4_16 = arith.constant 4 : index
    %6 = vector.load %arg1[%c0_12, %c0_13, %c1_14, %c0_15, %c4_16] : memref<1x8x2x8x8xf32, #tpu.memory_space<vmem>>, vector<1x8x1x8x4xf32>
    %7 = vector.shape_cast %6 : vector<1x8x1x8x4xf32> to vector<8x8x4xf32>
    %8 = arith.maximumf %1, %3 : vector<8x8x4xf32>
    %9 = arith.maximumf %5, %7 : vector<8x8x4xf32>
    %10 = arith.maximumf %8, %9 : vector<8x8x4xf32>
    %cst = arith.constant 0.000000e+00 : f32
    %11 = vector.broadcast %cst : f32 to vector<10x10x4xf32>
    %c0_17 = arith.constant 0 : index
    %c0_18 = arith.constant 0 : index
    %c0_19 = arith.constant 0 : index
    %12 = vector.load %arg9[%c0_17, %c0_18, %c0_19] : memref<10x10x4xf32, #tpu.memory_space<vmem>>, vector<10x10x4xf32>
    tpu.vector_store %arg9[%c0_17, %c0_18, %c0_19], %11 {strides = array<i32>} : memref<10x10x4xf32, #tpu.memory_space<vmem>>, vector<10x10x4xf32>,
    %c1_20 = arith.constant 1 : index
    %c1_21 = arith.constant 1 : index
    %c0_22 = arith.constant 0 : index
    %13 = vector.load %arg9[%c1_20, %c1_21, %c0_22] : memref<10x10x4xf32, #tpu.memory_space<vmem>>, vector<8x8x4xf32>
    tpu.vector_store %arg9[%c1_20, %c1_21, %c0_22], %10 {strides = array<i32>} : memref<10x10x4xf32, #tpu.memory_space<vmem>>, vector<8x8x4xf32>,
    %c0_23 = arith.constant 0 : index
    %c0_24 = arith.constant 0 : index
    %c0_25 = arith.constant 0 : index
    %14 = vector.load %arg9[%c0_23, %c0_24, %c0_25] : memref<10x10x4xf32, #tpu.memory_space<vmem>>, vector<8x8x4xf32>
    %15 = vector.shape_cast %14 : vector<8x8x4xf32> to vector<64x4xf32>
    %16 = arith.truncf %15 : vector<64x4xf32> to vector<64x4xbf16>
    %c0_26 = arith.constant 0 : index
    %c0_27 = arith.constant 0 : index
    %17 = vector.load %arg10[%c0_26, %c0_27] : memref<64x36xbf16, #tpu.memory_space<vmem>>, vector<64x4xbf16>
    tpu.vector_store %arg10[%c0_26, %c0_27], %16 {strides = array<i32>} : memref<64x36xbf16, #tpu.memory_space<vmem>>, vector<64x4xbf16>,
    %c0_28 = arith.constant 0 : index
    %c1_29 = arith.constant 1 : index
    %c0_30 = arith.constant 0 : index
    %18 = vector.load %arg9[%c0_28, %c1_29, %c0_30] : memref<10x10x4xf32, #tpu.memory_space<vmem>>, vector<8x8x4xf32>
    %19 = vector.shape_cast %18 : vector<8x8x4xf32> to vector<64x4xf32>
    %20 = arith.truncf %19 : vector<64x4xf32> to vector<64x4xbf16>
    %c0_31 = arith.constant 0 : index
    %c4_32 = arith.constant 4 : index
    %21 = vector.load %arg10[%c0_31, %c4_32] : memref<64x36xbf16, #tpu.memory_space<vmem>>, vector<64x4xbf16>
    tpu.vector_store %arg10[%c0_31, %c4_32], %20 {strides = array<i32>} : memref<64x36xbf16, #tpu.memory_space<vmem>>, vector<64x4xbf16>,
    %c0_33 = arith.constant 0 : index
    %c2 = arith.constant 2 : index
    %c0_34 = arith.constant 0 : index
    %22 = vector.load %arg9[%c0_33, %c2, %c0_34] : memref<10x10x4xf32, #tpu.memory_space<vmem>>, vector<8x8x4xf32>
    %23 = vector.shape_cast %22 : vector<8x8x4xf32> to vector<64x4xf32>
    %24 = arith.truncf %23 : vector<64x4xf32> to vector<64x4xbf16>
    %c0_35 = arith.constant 0 : index
    %c8 = arith.constant 8 : index
    %25 = vector.load %arg10[%c0_35, %c8] : memref<64x36xbf16, #tpu.memory_space<vmem>>, vector<64x4xbf16>
    tpu.vector_store %arg10[%c0_35, %c8], %24 {strides = array<i32>} : memref<64x36xbf16, #tpu.memory_space<vmem>>, vector<64x4xbf16>,
    %c1_36 = arith.constant 1 : index
    %c0_37 = arith.constant 0 : index
    %c0_38 = arith.constant 0 : index
    %26 = vector.load %arg9[%c1_36, %c0_37, %c0_38] : memref<10x10x4xf32, #tpu.memory_space<vmem>>, vector<8x8x4xf32>
    %27 = vector.shape_cast %26 : vector<8x8x4xf32> to vector<64x4xf32>
    %28 = arith.truncf %27 : vector<64x4xf32> to vector<64x4xbf16>
    %c0_39 = arith.constant 0 : index
    %c12 = arith.constant 12 : index
    %29 = vector.load %arg10[%c0_39, %c12] : memref<64x36xbf16, #tpu.memory_space<vmem>>, vector<64x4xbf16>
    tpu.vector_store %arg10[%c0_39, %c12], %28 {strides = array<i32>} : memref<64x36xbf16, #tpu.memory_space<vmem>>, vector<64x4xbf16>,
    %c1_40 = arith.constant 1 : index
    %c1_41 = arith.constant 1 : index
    %c0_42 = arith.constant 0 : index
    %30 = vector.load %arg9[%c1_40, %c1_41, %c0_42] : memref<10x10x4xf32, #tpu.memory_space<vmem>>, vector<8x8x4xf32>
    %31 = vector.shape_cast %30 : vector<8x8x4xf32> to vector<64x4xf32>
    %32 = arith.truncf %31 : vector<64x4xf32> to vector<64x4xbf16>
    %c0_43 = arith.constant 0 : index
    %c16 = arith.constant 16 : index
    %33 = vector.load %arg10[%c0_43, %c16] : memref<64x36xbf16, #tpu.memory_space<vmem>>, vector<64x4xbf16>
    tpu.vector_store %arg10[%c0_43, %c16], %32 {strides = array<i32>} : memref<64x36xbf16, #tpu.memory_space<vmem>>, vector<64x4xbf16>,
    %c1_44 = arith.constant 1 : index
    %c2_45 = arith.constant 2 : index
    %c0_46 = arith.constant 0 : index
    %34 = vector.load %arg9[%c1_44, %c2_45, %c0_46] : memref<10x10x4xf32, #tpu.memory_space<vmem>>, vector<8x8x4xf32>
    %35 = vector.shape_cast %34 : vector<8x8x4xf32> to vector<64x4xf32>
    %36 = arith.truncf %35 : vector<64x4xf32> to vector<64x4xbf16>
    %c0_47 = arith.constant 0 : index
    %c20 = arith.constant 20 : index
    %37 = vector.load %arg10[%c0_47, %c20] : memref<64x36xbf16, #tpu.memory_space<vmem>>, vector<64x4xbf16>
    tpu.vector_store %arg10[%c0_47, %c20], %36 {strides = array<i32>} : memref<64x36xbf16, #tpu.memory_space<vmem>>, vector<64x4xbf16>,
    %c2_48 = arith.constant 2 : index
    %c0_49 = arith.constant 0 : index
    %c0_50 = arith.constant 0 : index
    %38 = vector.load %arg9[%c2_48, %c0_49, %c0_50] : memref<10x10x4xf32, #tpu.memory_space<vmem>>, vector<8x8x4xf32>
    %39 = vector.shape_cast %38 : vector<8x8x4xf32> to vector<64x4xf32>
    %40 = arith.truncf %39 : vector<64x4xf32> to vector<64x4xbf16>
    %c0_51 = arith.constant 0 : index
    %c24 = arith.constant 24 : index
    %41 = vector.load %arg10[%c0_51, %c24] : memref<64x36xbf16, #tpu.memory_space<vmem>>, vector<64x4xbf16>
    tpu.vector_store %arg10[%c0_51, %c24], %40 {strides = array<i32>} : memref<64x36xbf16, #tpu.memory_space<vmem>>, vector<64x4xbf16>,
    %c2_52 = arith.constant 2 : index
    %c1_53 = arith.constant 1 : index
    %c0_54 = arith.constant 0 : index
    %42 = vector.load %arg9[%c2_52, %c1_53, %c0_54] : memref<10x10x4xf32, #tpu.memory_space<vmem>>, vector<8x8x4xf32>
    %43 = vector.shape_cast %42 : vector<8x8x4xf32> to vector<64x4xf32>
    %44 = arith.truncf %43 : vector<64x4xf32> to vector<64x4xbf16>
    %c0_55 = arith.constant 0 : index
    %c28 = arith.constant 28 : index
    %45 = vector.load %arg10[%c0_55, %c28] : memref<64x36xbf16, #tpu.memory_space<vmem>>, vector<64x4xbf16>
    tpu.vector_store %arg10[%c0_55, %c28], %44 {strides = array<i32>} : memref<64x36xbf16, #tpu.memory_space<vmem>>, vector<64x4xbf16>,
    %c2_56 = arith.constant 2 : index
    %c2_57 = arith.constant 2 : index
    %c0_58 = arith.constant 0 : index
    %46 = vector.load %arg9[%c2_56, %c2_57, %c0_58] : memref<10x10x4xf32, #tpu.memory_space<vmem>>, vector<8x8x4xf32>
    %47 = vector.shape_cast %46 : vector<8x8x4xf32> to vector<64x4xf32>
    %48 = arith.truncf %47 : vector<64x4xf32> to vector<64x4xbf16>
    %c0_59 = arith.constant 0 : index
    %c32 = arith.constant 32 : index
    %49 = vector.load %arg10[%c0_59, %c32] : memref<64x36xbf16, #tpu.memory_space<vmem>>, vector<64x4xbf16>
    tpu.vector_store %arg10[%c0_59, %c32], %48 {strides = array<i32>} : memref<64x36xbf16, #tpu.memory_space<vmem>>, vector<64x4xbf16>,
    %c0_60 = arith.constant 0 : index
    %c0_61 = arith.constant 0 : index
    %50 = vector.load %arg10[%c0_60, %c0_61] : memref<64x36xbf16, #tpu.memory_space<vmem>>, vector<64x36xbf16>
    %c0_62 = arith.constant 0 : index
    %c0_63 = arith.constant 0 : index
    %51 = vector.load %arg2[%c0_62, %c0_63] : memref<36x8xbf16, #tpu.memory_space<vmem>>, vector<36x8xbf16>
    %cst_64 = arith.constant dense<0.000000e+00> : vector<64x8xf32>
    %52 = tpu.matmul %50, %51, %cst_64 {dimension_numbers = #tpu.dot_dimension_numbers<[1], [0], [0], [1], [0, 0, 1, 1], [], []>} : vector<64x36xbf16>, vector<36x8xbf16>, vector<64x8xf32> -> vector<64x8xf32>
    %c0_65 = arith.constant 0 : index
    %c0_66 = arith.constant 0 : index
    %53 = vector.load %arg3[%c0_65, %c0_66] : memref<1x8xf32, #tpu.memory_space<vmem>>, vector<1x8xf32>
    %54 = vector.broadcast %53 : vector<1x8xf32> to vector<64x8xf32>
    %55 = arith.mulf %52, %54 : vector<64x8xf32>
    %c0_67 = arith.constant 0 : index
    %c0_68 = arith.constant 0 : index
    %56 = vector.load %arg4[%c0_67, %c0_68] : memref<1x8xf32, #tpu.memory_space<vmem>>, vector<1x8xf32>
    %57 = vector.broadcast %56 : vector<1x8xf32> to vector<64x8xf32>
    %58 = arith.addf %55, %57 : vector<64x8xf32>
    %cst_69 = arith.constant 0.000000e+00 : f32
    %59 = vector.broadcast %cst_69 : f32 to vector<64x8xf32>
    %60 = arith.maximumf %58, %59 : vector<64x8xf32>
    %cst_70 = arith.constant 0.000000e+00 : f32
    %61 = vector.broadcast %cst_70 : f32 to vector<10x10x8xf32>
    %c0_71 = arith.constant 0 : index
    %c0_72 = arith.constant 0 : index
    %c0_73 = arith.constant 0 : index
    %62 = vector.load %arg11[%c0_71, %c0_72, %c0_73] : memref<10x10x8xf32, #tpu.memory_space<vmem>>, vector<10x10x8xf32>
    tpu.vector_store %arg11[%c0_71, %c0_72, %c0_73], %61 {strides = array<i32>} : memref<10x10x8xf32, #tpu.memory_space<vmem>>, vector<10x10x8xf32>,
    %63 = vector.shape_cast %60 : vector<64x8xf32> to vector<8x8x8xf32>
    %c1_74 = arith.constant 1 : index
    %c1_75 = arith.constant 1 : index
    %c0_76 = arith.constant 0 : index
    %64 = vector.load %arg11[%c1_74, %c1_75, %c0_76] : memref<10x10x8xf32, #tpu.memory_space<vmem>>, vector<8x8x8xf32>
    tpu.vector_store %arg11[%c1_74, %c1_75, %c0_76], %63 {strides = array<i32>} : memref<10x10x8xf32, #tpu.memory_space<vmem>>, vector<8x8x8xf32>,
    %c0_77 = arith.constant 0 : index
    %c0_78 = arith.constant 0 : index
    %c0_79 = arith.constant 0 : index
    %65 = vector.load %arg11[%c0_77, %c0_78, %c0_79] : memref<10x10x8xf32, #tpu.memory_space<vmem>>, vector<8x8x8xf32>
    %66 = vector.shape_cast %65 : vector<8x8x8xf32> to vector<64x8xf32>
    %67 = arith.truncf %66 : vector<64x8xf32> to vector<64x8xbf16>
    %c0_80 = arith.constant 0 : index
    %c0_81 = arith.constant 0 : index
    %68 = vector.load %arg12[%c0_80, %c0_81] : memref<64x72xbf16, #tpu.memory_space<vmem>>, vector<64x8xbf16>
    tpu.vector_store %arg12[%c0_80, %c0_81], %67 {strides = array<i32>} : memref<64x72xbf16, #tpu.memory_space<vmem>>, vector<64x8xbf16>,
    %c0_82 = arith.constant 0 : index
    %c1_83 = arith.constant 1 : index
    %c0_84 = arith.constant 0 : index
    %69 = vector.load %arg11[%c0_82, %c1_83, %c0_84] : memref<10x10x8xf32, #tpu.memory_space<vmem>>, vector<8x8x8xf32>
    %70 = vector.shape_cast %69 : vector<8x8x8xf32> to vector<64x8xf32>
    %71 = arith.truncf %70 : vector<64x8xf32> to vector<64x8xbf16>
    %c0_85 = arith.constant 0 : index
    %c8_86 = arith.constant 8 : index
    %72 = vector.load %arg12[%c0_85, %c8_86] : memref<64x72xbf16, #tpu.memory_space<vmem>>, vector<64x8xbf16>
    tpu.vector_store %arg12[%c0_85, %c8_86], %71 {strides = array<i32>} : memref<64x72xbf16, #tpu.memory_space<vmem>>, vector<64x8xbf16>,
    %c0_87 = arith.constant 0 : index
    %c2_88 = arith.constant 2 : index
    %c0_89 = arith.constant 0 : index
    %73 = vector.load %arg11[%c0_87, %c2_88, %c0_89] : memref<10x10x8xf32, #tpu.memory_space<vmem>>, vector<8x8x8xf32>
    %74 = vector.shape_cast %73 : vector<8x8x8xf32> to vector<64x8xf32>
    %75 = arith.truncf %74 : vector<64x8xf32> to vector<64x8xbf16>
    %c0_90 = arith.constant 0 : index
    %c16_91 = arith.constant 16 : index
    %76 = vector.load %arg12[%c0_90, %c16_91] : memref<64x72xbf16, #tpu.memory_space<vmem>>, vector<64x8xbf16>
    tpu.vector_store %arg12[%c0_90, %c16_91], %75 {strides = array<i32>} : memref<64x72xbf16, #tpu.memory_space<vmem>>, vector<64x8xbf16>,
    %c1_92 = arith.constant 1 : index
    %c0_93 = arith.constant 0 : index
    %c0_94 = arith.constant 0 : index
    %77 = vector.load %arg11[%c1_92, %c0_93, %c0_94] : memref<10x10x8xf32, #tpu.memory_space<vmem>>, vector<8x8x8xf32>
    %78 = vector.shape_cast %77 : vector<8x8x8xf32> to vector<64x8xf32>
    %79 = arith.truncf %78 : vector<64x8xf32> to vector<64x8xbf16>
    %c0_95 = arith.constant 0 : index
    %c24_96 = arith.constant 24 : index
    %80 = vector.load %arg12[%c0_95, %c24_96] : memref<64x72xbf16, #tpu.memory_space<vmem>>, vector<64x8xbf16>
    tpu.vector_store %arg12[%c0_95, %c24_96], %79 {strides = array<i32>} : memref<64x72xbf16, #tpu.memory_space<vmem>>, vector<64x8xbf16>,
    %c1_97 = arith.constant 1 : index
    %c1_98 = arith.constant 1 : index
    %c0_99 = arith.constant 0 : index
    %81 = vector.load %arg11[%c1_97, %c1_98, %c0_99] : memref<10x10x8xf32, #tpu.memory_space<vmem>>, vector<8x8x8xf32>
    %82 = vector.shape_cast %81 : vector<8x8x8xf32> to vector<64x8xf32>
    %83 = arith.truncf %82 : vector<64x8xf32> to vector<64x8xbf16>
    %c0_100 = arith.constant 0 : index
    %c32_101 = arith.constant 32 : index
    %84 = vector.load %arg12[%c0_100, %c32_101] : memref<64x72xbf16, #tpu.memory_space<vmem>>, vector<64x8xbf16>
    tpu.vector_store %arg12[%c0_100, %c32_101], %83 {strides = array<i32>} : memref<64x72xbf16, #tpu.memory_space<vmem>>, vector<64x8xbf16>,
    %c1_102 = arith.constant 1 : index
    %c2_103 = arith.constant 2 : index
    %c0_104 = arith.constant 0 : index
    %85 = vector.load %arg11[%c1_102, %c2_103, %c0_104] : memref<10x10x8xf32, #tpu.memory_space<vmem>>, vector<8x8x8xf32>
    %86 = vector.shape_cast %85 : vector<8x8x8xf32> to vector<64x8xf32>
    %87 = arith.truncf %86 : vector<64x8xf32> to vector<64x8xbf16>
    %c0_105 = arith.constant 0 : index
    %c40 = arith.constant 40 : index
    %88 = vector.load %arg12[%c0_105, %c40] : memref<64x72xbf16, #tpu.memory_space<vmem>>, vector<64x8xbf16>
    tpu.vector_store %arg12[%c0_105, %c40], %87 {strides = array<i32>} : memref<64x72xbf16, #tpu.memory_space<vmem>>, vector<64x8xbf16>,
    %c2_106 = arith.constant 2 : index
    %c0_107 = arith.constant 0 : index
    %c0_108 = arith.constant 0 : index
    %89 = vector.load %arg11[%c2_106, %c0_107, %c0_108] : memref<10x10x8xf32, #tpu.memory_space<vmem>>, vector<8x8x8xf32>
    %90 = vector.shape_cast %89 : vector<8x8x8xf32> to vector<64x8xf32>
    %91 = arith.truncf %90 : vector<64x8xf32> to vector<64x8xbf16>
    %c0_109 = arith.constant 0 : index
    %c48 = arith.constant 48 : index
    %92 = vector.load %arg12[%c0_109, %c48] : memref<64x72xbf16, #tpu.memory_space<vmem>>, vector<64x8xbf16>
    tpu.vector_store %arg12[%c0_109, %c48], %91 {strides = array<i32>} : memref<64x72xbf16, #tpu.memory_space<vmem>>, vector<64x8xbf16>,
    %c2_110 = arith.constant 2 : index
    %c1_111 = arith.constant 1 : index
    %c0_112 = arith.constant 0 : index
    %93 = vector.load %arg11[%c2_110, %c1_111, %c0_112] : memref<10x10x8xf32, #tpu.memory_space<vmem>>, vector<8x8x8xf32>
    %94 = vector.shape_cast %93 : vector<8x8x8xf32> to vector<64x8xf32>
    %95 = arith.truncf %94 : vector<64x8xf32> to vector<64x8xbf16>
    %c0_113 = arith.constant 0 : index
    %c56 = arith.constant 56 : index
    %96 = vector.load %arg12[%c0_113, %c56] : memref<64x72xbf16, #tpu.memory_space<vmem>>, vector<64x8xbf16>
    tpu.vector_store %arg12[%c0_113, %c56], %95 {strides = array<i32>} : memref<64x72xbf16, #tpu.memory_space<vmem>>, vector<64x8xbf16>,
    %c2_114 = arith.constant 2 : index
    %c2_115 = arith.constant 2 : index
    %c0_116 = arith.constant 0 : index
    %97 = vector.load %arg11[%c2_114, %c2_115, %c0_116] : memref<10x10x8xf32, #tpu.memory_space<vmem>>, vector<8x8x8xf32>
    %98 = vector.shape_cast %97 : vector<8x8x8xf32> to vector<64x8xf32>
    %99 = arith.truncf %98 : vector<64x8xf32> to vector<64x8xbf16>
    %c0_117 = arith.constant 0 : index
    %c64 = arith.constant 64 : index
    %100 = vector.load %arg12[%c0_117, %c64] : memref<64x72xbf16, #tpu.memory_space<vmem>>, vector<64x8xbf16>
    tpu.vector_store %arg12[%c0_117, %c64], %99 {strides = array<i32>} : memref<64x72xbf16, #tpu.memory_space<vmem>>, vector<64x8xbf16>,
    %c0_118 = arith.constant 0 : index
    %c0_119 = arith.constant 0 : index
    %101 = vector.load %arg12[%c0_118, %c0_119] : memref<64x72xbf16, #tpu.memory_space<vmem>>, vector<64x72xbf16>
    %c0_120 = arith.constant 0 : index
    %c0_121 = arith.constant 0 : index
    %102 = vector.load %arg5[%c0_120, %c0_121] : memref<72x8xbf16, #tpu.memory_space<vmem>>, vector<72x8xbf16>
    %cst_122 = arith.constant dense<0.000000e+00> : vector<64x8xf32>
    %103 = tpu.matmul %101, %102, %cst_122 {dimension_numbers = #tpu.dot_dimension_numbers<[1], [0], [0], [1], [0, 0, 1, 1], [], []>} : vector<64x72xbf16>, vector<72x8xbf16>, vector<64x8xf32> -> vector<64x8xf32>
    %c0_123 = arith.constant 0 : index
    %c0_124 = arith.constant 0 : index
    %104 = vector.load %arg6[%c0_123, %c0_124] : memref<1x8xf32, #tpu.memory_space<vmem>>, vector<1x8xf32>
    %105 = vector.broadcast %104 : vector<1x8xf32> to vector<64x8xf32>
    %106 = arith.mulf %103, %105 : vector<64x8xf32>
    %c0_125 = arith.constant 0 : index
    %c0_126 = arith.constant 0 : index
    %107 = vector.load %arg7[%c0_125, %c0_126] : memref<1x8xf32, #tpu.memory_space<vmem>>, vector<1x8xf32>
    %108 = vector.broadcast %107 : vector<1x8xf32> to vector<64x8xf32>
    %109 = arith.addf %106, %108 : vector<64x8xf32>
    %cst_127 = arith.constant 0.000000e+00 : f32
    %110 = vector.broadcast %cst_127 : f32 to vector<64x8xf32>
    %111 = arith.maximumf %109, %110 : vector<64x8xf32>
    %112 = vector.shape_cast %111 : vector<64x8xf32> to vector<8x8x8xf32>
    %c0_128 = arith.constant 0 : index
    %c0_129 = arith.constant 0 : index
    %c0_130 = arith.constant 0 : index
    %c0_131 = arith.constant 0 : index
    %113 = vector.load %arg8[%c0_128, %c0_129, %c0_130, %c0_131] : memref<1x8x8x8xf32, #tpu.memory_space<vmem>>, vector<1x8x8x8xf32>
    %114 = vector.shape_cast %113 : vector<1x8x8x8xf32> to vector<8x8x8xf32>
    %115 = vector.shape_cast %112 : vector<8x8x8xf32> to vector<1x8x8x8xf32>
    tpu.vector_store %arg8[%c0_128, %c0_129, %c0_130, %c0_131], %115 {strides = array<i32>} : memref<1x8x8x8xf32, #tpu.memory_space<vmem>>, vector<1x8x8x8xf32>,
    return
  }
  func.func @transform_0(%arg0: i32) -> (i32, i32, i32, i32, i32) {
    %c0_i32 = arith.constant 0 : i32
    %c0_i32_0 = arith.constant 0 : i32
    %c0_i32_1 = arith.constant 0 : i32
    %c0_i32_2 = arith.constant 0 : i32
    %c0_i32_3 = arith.constant 0 : i32
    return %arg0, %c0_i32, %c0_i32_0, %c0_i32_1, %c0_i32_2 : i32, i32, i32, i32, i32
  }
  func.func @transform_1(%arg0: i32) -> (i32, i32) {
    %c0_i32 = arith.constant 0 : i32
    %c0_i32_0 = arith.constant 0 : i32
    %c0_i32_1 = arith.constant 0 : i32
    return %c0_i32, %c0_i32_0 : i32, i32
  }
  func.func @transform_2(%arg0: i32) -> (i32, i32) {
    %c0_i32 = arith.constant 0 : i32
    %c0_i32_0 = arith.constant 0 : i32
    %c0_i32_1 = arith.constant 0 : i32
    return %c0_i32, %c0_i32_0 : i32, i32
  }
  func.func @transform_3(%arg0: i32) -> (i32, i32) {
    %c0_i32 = arith.constant 0 : i32
    %c0_i32_0 = arith.constant 0 : i32
    %c0_i32_1 = arith.constant 0 : i32
    return %c0_i32, %c0_i32_0 : i32, i32
  }
  func.func @transform_4(%arg0: i32) -> (i32, i32) {
    %c0_i32 = arith.constant 0 : i32
    %c0_i32_0 = arith.constant 0 : i32
    %c0_i32_1 = arith.constant 0 : i32
    return %c0_i32, %c0_i32_0 : i32, i32
  }
  func.func @transform_5(%arg0: i32) -> (i32, i32) {
    %c0_i32 = arith.constant 0 : i32
    %c0_i32_0 = arith.constant 0 : i32
    %c0_i32_1 = arith.constant 0 : i32
    return %c0_i32, %c0_i32_0 : i32, i32
  }
  func.func @transform_6(%arg0: i32) -> (i32, i32) {
    %c0_i32 = arith.constant 0 : i32
    %c0_i32_0 = arith.constant 0 : i32
    %c0_i32_1 = arith.constant 0 : i32
    return %c0_i32, %c0_i32_0 : i32, i32
  }
  func.func @transform_7(%arg0: i32) -> (i32, i32, i32, i32) {
    %c0_i32 = arith.constant 0 : i32
    %c0_i32_0 = arith.constant 0 : i32
    %c0_i32_1 = arith.constant 0 : i32
    %c0_i32_2 = arith.constant 0 : i32
    return %arg0, %c0_i32, %c0_i32_0, %c0_i32_1 : i32, i32, i32, i32
  }
}

</mosaic_0001>

<llo_original>
// kernel: tpu_custom_call.1
$region0: #{tpu_custom_call.1}
  #allocation0 [shape = 'u32[]', space=smem, size = 0x4, offset = 0x4, fixed_abs, tag = 'smem constant byte address 0x4 - core index']
  #allocation1 [shape = 'u32[144,128]{1,0:T(1,128)}', space=vmem, size = 0x12000, scoped, tag = 'internal scratch']
  #allocation2 [shape = 'f32[10,10,4]{2,1,0:T(8,128)}', space=vmem, size = 0x14000, scoped, tag = 'scratch operand']
  #allocation3 [shape = 'bf16[64,36]{1,0:T(16,128)(2,1)}', space=vmem, size = 0x4000, scoped, tag = 'scratch operand']
  #allocation4 [shape = 'f32[10,10,8]{2,1,0:T(8,128)}', space=vmem, size = 0x14000, scoped, tag = 'scratch operand']
  #allocation5 [shape = 'bf16[64,72]{1,0:T(16,128)(2,1)}', space=vmem, size = 0x4000, scoped, tag = 'scratch operand']
  %s0 = inlined_call_operand.hbm [shape: f32[2,8,2,8,8], index: 0, kind: input, shape index: {}]
  %s1 = inlined_call_operand.vmem [shape: bf16[36,8], index: 1, kind: input, shape index: {}]
  %s2 = inlined_call_operand.vmem [shape: f32[1,8], index: 2, kind: input, shape index: {}]
  %s3 = inlined_call_operand.vmem [shape: f32[1,8], index: 3, kind: input, shape index: {}]
  %s4 = inlined_call_operand.vmem [shape: bf16[72,8], index: 4, kind: input, shape index: {}]
  %s5 = inlined_call_operand.vmem [shape: f32[1,8], index: 5, kind: input, shape index: {}]
  %s6 = inlined_call_operand.vmem [shape: f32[1,8], index: 6, kind: input, shape index: {}]
  %s7 = inlined_call_operand.hbm [shape: f32[2,8,8,8], index: 7, kind: output, shape index: {}]
  %s8 = sld [smem:[#allocation0]]
  $region65: #{tpu_custom_call.1} parent=0
    _
  %s10 = ssub.s32 1, %s8
  %s11 = scalar_select 0, %s10, %s8
  $region1: #{tpu_custom_call.1} parent=0
    #allocation6 [shape = 'u8[131072]{0}', space=vmem, size = 0x20000, scoped, tag = 'input window, operand 0']
    #allocation7 [shape = 's32[2]{0}', space=sflag, size = 0x8, scoped, tag = 'scoped memory for tpu_custom_call.1']
    #allocation8 [shape = 's32[2]{0}', space=sflag, size = 0x8, scoped, tag = 'scoped memory for tpu_custom_call.1']
    #allocation9 [shape = 'u8[65536]{0}', space=vmem, size = 0x10000, scoped, tag = 'output window, operand 0']
    %12 = vsyncpa [#allocation7], 0
    %s13 = scalar_lea.sflag [#allocation7], 1
    %14 = vsyncpa %s13, 0
    %15 = vsyncpa [#allocation8], 0
    %s16 = scalar_lea.sflag [#allocation8], 1
    %17 = vsyncpa %s16, 0
    loop: start=0, step=1, limit=4
    $region2: #{tpu_custom_call.1} parent=1 // loop_pre_header
      _
    $region3: #{tpu_custom_call.1} parent=1 // loop_header
      %s19 = sphi 0, %s23
      %p20 = scmp.ge.s32.totalorder %s19, 4
      %s29 = sphi 0, %s31
      %s32 = sphi 0, %s29
      %s33 = sphi 0, %s32
      %s49 = sphi 0, %s33
      %s53 = sphi 0, %s53
      %s55 = sphi 0, %s53
      %s56 = sphi 0, %s55
      %s70 = sphi 0, %s56
      %s74 = sphi 0, %s74
      %s76 = sphi 0, %s74
      %s77 = sphi 0, %s76
      %s91 = sphi 0, %s77
      %s95 = sphi 0, %s95
      %s97 = sphi 0, %s95
      %s98 = sphi 0, %s97
      %s112 = sphi 0, %s98
      %s116 = sphi 0, %s116
      %s118 = sphi 0, %s116
      %s119 = sphi 0, %s118
      %s133 = sphi 0, %s119
      %s137 = sphi 0, %s137
      %s139 = sphi 0, %s137
      %s140 = sphi 0, %s139
      %s154 = sphi 0, %s140
      %s158 = sphi 0, %s158
      %s160 = sphi 0, %s158
      %s161 = sphi 0, %s160
      %s175 = sphi 0, %s161
      %s181 = sphi 0, %s183
      %s184 = sphi 0, %s181
      %s185 = sphi 0, %s184
      %s201 = sphi 0, %s185
    $region4: #{tpu_custom_call.1} parent=1 // loop_header_branch
      %22 = sbr.rel (%p20) target = $region8
    $region5: #{tpu_custom_call.1} parent=1 // loop_body
      %s24 = ssub.s32 %s19, 1
      %s25 = ssub.s32 %s19, 2
      %s26 = sadd.s32 %s19, 1
      %s27 = ssub.s32 %s19, %s26
      %p28 = scmp.eq.s32.totalorder %s27, 0
      %s30 = sadd.s32 %s29, 1
      %s31 = scalar_select %p28, %s29, %s30
      %p34 = pneg %p28
      %p35 = scmp.eq.s32.totalorder %s19, 1
      %p36 = por %p34, %p35
      %p37 = scmp.ne.s32.totalorder %s29, %s32
      %p38 = scmp.eq.s32.totalorder %s19, 0
      %p39 = por %p37, %p38
      %p40 = scmp.ne.s32.totalorder %s29, %s32
      %p41 = scmp.eq.s32.totalorder %s24, 1
      %p42 = por %p40, %p41
      %p43 = scmp.ne.s32.totalorder %s32, %s33
      %p44 = scmp.eq.s32.totalorder %s24, 0
      %p45 = por %p43, %p44
      %p46 = scmp.ne.s32.totalorder %s32, %s33
      %p47 = scmp.eq.s32.totalorder %s25, 1
      %p48 = por %p46, %p47
      %p50 = scmp.ne.s32.totalorder %s33, %s49
      %p51 = scmp.eq.s32.totalorder %s25, 0
      %p52 = por %p50, %p51
      %s54 = sadd.s32 %s53, 1
      %p57 = scmp.eq.s32.totalorder %s19, 1
      %p58 = scmp.ne.s32.totalorder %s53, %s55
      %p59 = scmp.eq.s32.totalorder %s19, 0
      %p60 = por %p58, %p59
      %p61 = scmp.ne.s32.totalorder %s53, %s55
      %p62 = scmp.eq.s32.totalorder %s24, 1
      %p63 = por %p61, %p62
      %p64 = scmp.ne.s32.totalorder %s55, %s56
      %p65 = scmp.eq.s32.totalorder %s24, 0
      %p66 = por %p64, %p65
      %p67 = scmp.ne.s32.totalorder %s55, %s56
      %p68 = scmp.eq.s32.totalorder %s25, 1
      %p69 = por %p67, %p68
      %p71 = scmp.ne.s32.totalorder %s56, %s70
      %p72 = scmp.eq.s32.totalorder %s25, 0
      %p73 = por %p71, %p72
      %s75 = sadd.s32 %s74, 1
      %p78 = scmp.eq.s32.totalorder %s19, 1
      %p79 = scmp.ne.s32.totalorder %s74, %s76
      %p80 = scmp.eq.s32.totalorder %s19, 0
      %p81 = por %p79, %p80
      %p82 = scmp.ne.s32.totalorder %s74, %s76
      %p83 = scmp.eq.s32.totalorder %s24, 1
      %p84 = por %p82, %p83
      %p85 = scmp.ne.s32.totalorder %s76, %s77
      %p86 = scmp.eq.s32.totalorder %s24, 0
      %p87 = por %p85, %p86
      %p88 = scmp.ne.s32.totalorder %s76, %s77
      %p89 = scmp.eq.s32.totalorder %s25, 1
      %p90 = por %p88, %p89
      %p92 = scmp.ne.s32.totalorder %s77, %s91
      %p93 = scmp.eq.s32.totalorder %s25, 0
      %p94 = por %p92, %p93
      %s96 = sadd.s32 %s95, 1
      %p99 = scmp.eq.s32.totalorder %s19, 1
      %p100 = scmp.ne.s32.totalorder %s95, %s97
      %p101 = scmp.eq.s32.totalorder %s19, 0
      %p102 = por %p100, %p101
      %p103 = scmp.ne.s32.totalorder %s95, %s97
      %p104 = scmp.eq.s32.totalorder %s24, 1
      %p105 = por %p103, %p104
      %p106 = scmp.ne.s32.totalorder %s97, %s98
      %p107 = scmp.eq.s32.totalorder %s24, 0
      %p108 = por %p106, %p107
      %p109 = scmp.ne.s32.totalorder %s97, %s98
      %p110 = scmp.eq.s32.totalorder %s25, 1
      %p111 = por %p109, %p110
      %p113 = scmp.ne.s32.totalorder %s98, %s112
      %p114 = scmp.eq.s32.totalorder %s25, 0
      %p115 = por %p113, %p114
      %s117 = sadd.s32 %s116, 1
      %p120 = scmp.eq.s32.totalorder %s19, 1
      %p121 = scmp.ne.s32.totalorder %s116, %s118
      %p122 = scmp.eq.s32.totalorder %s19, 0
      %p123 = por %p121, %p122
      %p124 = scmp.ne.s32.totalorder %s116, %s118
      %p125 = scmp.eq.s32.totalorder %s24, 1
      %p126 = por %p124, %p125
      %p127 = scmp.ne.s32.totalorder %s118, %s119
      %p128 = scmp.eq.s32.totalorder %s24, 0
      %p129 = por %p127, %p128
      %p130 = scmp.ne.s32.totalorder %s118, %s119
      %p131 = scmp.eq.s32.totalorder %s25, 1
      %p132 = por %p130, %p131
      %p134 = scmp.ne.s32.totalorder %s119, %s133
      %p135 = scmp.eq.s32.totalorder %s25, 0
      %p136 = por %p134, %p135
      %s138 = sadd.s32 %s137, 1
      %p141 = scmp.eq.s32.totalorder %s19, 1
      %p142 = scmp.ne.s32.totalorder %s137, %s139
      %p143 = scmp.eq.s32.totalorder %s19, 0
      %p144 = por %p142, %p143
      %p145 = scmp.ne.s32.totalorder %s137, %s139
      %p146 = scmp.eq.s32.totalorder %s24, 1
      %p147 = por %p145, %p146
      %p148 = scmp.ne.s32.totalorder %s139, %s140
      %p149 = scmp.eq.s32.totalorder %s24, 0
      %p150 = por %p148, %p149
      %p151 = scmp.ne.s32.totalorder %s139, %s140
      %p152 = scmp.eq.s32.totalorder %s25, 1
      %p153 = por %p151, %p152
      %p155 = scmp.ne.s32.totalorder %s140, %s154
      %p156 = scmp.eq.s32.totalorder %s25, 0
      %p157 = por %p155, %p156
      %s159 = sadd.s32 %s158, 1
      %p162 = scmp.eq.s32.totalorder %s19, 1
      %p163 = scmp.ne.s32.totalorder %s158, %s160
      %p164 = scmp.eq.s32.totalorder %s19, 0
      %p165 = por %p163, %p164
      %p166 = scmp.ne.s32.totalorder %s158, %s160
      %p167 = scmp.eq.s32.totalorder %s24, 1
      %p168 = por %p166, %p167
      %p169 = scmp.ne.s32.totalorder %s160, %s161
      %p170 = scmp.eq.s32.totalorder %s24, 0
      %p171 = por %p169, %p170
      %p172 = scmp.ne.s32.totalorder %s160, %s161
      %p173 = scmp.eq.s32.totalorder %s25, 1
      %p174 = por %p172, %p173
      %p176 = scmp.ne.s32.totalorder %s161, %s175
      %p177 = scmp.eq.s32.totalorder %s25, 0
      %p178 = por %p176, %p177
      %s179 = ssub.s32 %s19, %s26
      %p180 = scmp.eq.s32.totalorder %s179, 0
      %s182 = sadd.s32 %s181, 1
      %s183 = scalar_select %p180, %s181, %s182
      %p186 = pneg %p180
      %p187 = scmp.eq.s32.totalorder %s19, 1
      %p188 = por %p186, %p187
      %p189 = scmp.ne.s32.totalorder %s181, %s184
      %p190 = scmp.eq.s32.totalorder %s19, 0
      %p191 = por %p189, %p190
      %p192 = scmp.ne.s32.totalorder %s181, %s184
      %p193 = scmp.eq.s32.totalorder %s24, 1
      %p194 = por %p192, %p193
      %p195 = scmp.ne.s32.totalorder %s184, %s185
      %p196 = scmp.eq.s32.totalorder %s24, 0
      %p197 = por %p195, %p196
      %p198 = scmp.ne.s32.totalorder %s184, %s185
      %p199 = scmp.eq.s32.totalorder %s25, 1
      %p200 = por %p198, %p199
      %p202 = scmp.ne.s32.totalorder %s185, %s201
      %p203 = scmp.eq.s32.totalorder %s25, 0
      %p204 = por %p202, %p203
      %p205 = scmp.le.s32.totalorder 1, %s19
      %p206 = scmp.lt.s32.totalorder %s19, 3
      %p207 = pnand %p205, %p206
      %p208 = pneg %p207
      // Predicated region
      $region9: #{tpu_custom_call.1} parent=5 // pred_check
        _
      $region10: #{tpu_custom_call.1} parent=5 // pred_check_branch
        %210 = sbr.rel (%p207) target = $region12
      $region11: #{tpu_custom_call.1} parent=5 // pred_region
        %s211 = ssub.s32 %s19, 1
        // Predicated region
        $region13: #{tpu_custom_call.1} parent=11 // pred_check
          %p212 = pneg %p66
        $region14: #{tpu_custom_call.1} parent=11 // pred_check_branch
          %214 = sbr.rel (%p212) target = $region16
        $region15: #{tpu_custom_call.1} parent=11 // pred_region
          _
        $region16: #{tpu_custom_call.1} parent=11 // pred_fallthru
          _
        // Predicated region
        $region17: #{tpu_custom_call.1} parent=11 // pred_check
          %p215 = pneg %p87
        $region18: #{tpu_custom_call.1} parent=11 // pred_check_branch
          %217 = sbr.rel (%p215) target = $region20
        $region19: #{tpu_custom_call.1} parent=11 // pred_region
          _
        $region20: #{tpu_custom_call.1} parent=11 // pred_fallthru
          _
        // Predicated region
        $region21: #{tpu_custom_call.1} parent=11 // pred_check
          %p218 = pneg %p108
        $region22: #{tpu_custom_call.1} parent=11 // pred_check_branch
          %220 = sbr.rel (%p218) target = $region24
        $region23: #{tpu_custom_call.1} parent=11 // pred_region
          _
        $region24: #{tpu_custom_call.1} parent=11 // pred_fallthru
          _
        // Predicated region
        $region25: #{tpu_custom_call.1} parent=11 // pred_check
          %p221 = pneg %p129
        $region26: #{tpu_custom_call.1} parent=11 // pred_check_branch
          %223 = sbr.rel (%p221) target = $region28
        $region27: #{tpu_custom_call.1} parent=11 // pred_region
          _
        $region28: #{tpu_custom_call.1} parent=11 // pred_fallthru
          _
        // Predicated region
        $region29: #{tpu_custom_call.1} parent=11 // pred_check
          %p224 = pneg %p150
        $region30: #{tpu_custom_call.1} parent=11 // pred_check_branch
          %226 = sbr.rel (%p224) target = $region32
        $region31: #{tpu_custom_call.1} parent=11 // pred_region
          _
        $region32: #{tpu_custom_call.1} parent=11 // pred_fallthru
          _
        // Predicated region
        $region33: #{tpu_custom_call.1} parent=11 // pred_check
          %p227 = pneg %p171
        $region34: #{tpu_custom_call.1} parent=11 // pred_check_branch
          %229 = sbr.rel (%p227) target = $region36
        $region35: #{tpu_custom_call.1} parent=11 // pred_region
          _
        $region36: #{tpu_custom_call.1} parent=11 // pred_fallthru
          _
      $region12: #{tpu_custom_call.1} parent=5 // pred_fallthru
        _
      %p230 = scmp.lt.s32.totalorder %s19, 2
      // Predicated region
      $region37: #{tpu_custom_call.1} parent=5 // pred_check
        %p231 = pneg %p230
      $region38: #{tpu_custom_call.1} parent=5 // pred_check_branch
        %233 = sbr.rel (%p231) target = $region40
      $region39: #{tpu_custom_call.1} parent=5 // pred_region
        // Predicated region
        $region41: #{tpu_custom_call.1} parent=39 // pred_check
          %p234 = pneg %p39
        $region42: #{tpu_custom_call.1} parent=39 // pred_check_branch
          %236 = sbr.rel (%p234) target = $region44
        $region43: #{tpu_custom_call.1} parent=39 // pred_region
          %s237 = sand.u32 %s29, 1
          %s238 = scalar_lea.sflag [#allocation7], %s237
          %s239 = sand.u32 %s29, 1
          %s240 = smul.addr %s239, 128
          %s241 = scalar_lea.vmem [#allocation6], %s240
          %s243 = ssub.s32 2048, 2048
          %244 = vsyncadd %s238, %s243
          %s245 = smul.addr %s19, 16
          %s246 = smul.addr %s245, 128
          %s247 = scalar_lea.hbm %s0, %s246
          %s248 = sshll.u32 %s241, 4
          %s249 = int_to_ptr.vmem [resolvable:$true] %s248
          %254 = dma.hbm_to_vmem [thread:$0]  %s247, 2048, %s249, %s238, 128, 128, 8
        $region44: #{tpu_custom_call.1} parent=39 // pred_fallthru
          _
      $region40: #{tpu_custom_call.1} parent=5 // pred_fallthru
        _
      %p255 = scmp.le.s32.totalorder 1, %s19
      %p256 = scmp.lt.s32.totalorder %s19, 3
      %p257 = pnand %p255, %p256
      %p258 = pneg %p257
      // Predicated region
      $region45: #{tpu_custom_call.1} parent=5 // pred_check
        _
      $region46: #{tpu_custom_call.1} parent=5 // pred_check_branch
        %260 = sbr.rel (%p257) target = $region48
      $region47: #{tpu_custom_call.1} parent=5 // pred_region
        %s261 = ssub.s32 %s19, 1
        %s262 = sand.u32 %s32, 1
        %s263 = scalar_lea.sflag [#allocation7], %s262
        %s264 = sand.u32 %s32, 1
        %s265 = smul.addr %s264, 128
        %s266 = scalar_lea.vmem [#allocation6], %s265
        // Predicated region
        $region49: #{tpu_custom_call.1} parent=47 // pred_check
          %p267 = pneg %p45
        $region50: #{tpu_custom_call.1} parent=47 // pred_check_branch
          %269 = sbr.rel (%p267) target = $region52
        $region51: #{tpu_custom_call.1} parent=47 // pred_region
          %270 = dma.done %s263, 2048
        $region52: #{tpu_custom_call.1} parent=47 // pred_fallthru
          _
        %s271 = sand.u32 %s32, 1
        %s272 = scalar_lea.sflag [#allocation7], %s271
        %s273 = sand.u32 %s32, 1
        %s274 = smul.addr %s273, 128
        %s275 = scalar_lea.vmem [#allocation6], %s274
        %p276 = pneg %p45
        %p277 = pneg %p42
        %p278 = pneg %p66
        %p279 = pneg %p63
        %p280 = pneg %p87
        %p281 = pneg %p84
        %p282 = pneg %p108
        %p283 = pneg %p105
        %p284 = pneg %p129
        %p285 = pneg %p126
        %p286 = pneg %p150
        %p287 = pneg %p147
        %p288 = pneg %p171
        %p289 = pneg %p168
        %p290 = pneg %p197
        %p291 = pneg %p194
        %s292 = sand.u32 %s184, 1
        %s293 = scalar_lea.sflag [#allocation8], %s292
        %s294 = sand.u32 %s184, 1
        %s295 = smul.addr %s294, 64
        %s296 = scalar_lea.vmem [#allocation9], %s295
        %v298 = vld [vmem:[%s266] sm:$0xff]
        %v299 = vld [vmem:[%s266 + $0x10] sm:$0xff]
        %v300 = vld [vmem:[%s266 + $0x20] sm:$0xff]
        %v301 = vld [vmem:[%s266 + $0x30] sm:$0xff]
        %v302 = vld [vmem:[%s266 + $0x40] sm:$0xff]
        %v303 = vld [vmem:[%s266 + $0x50] sm:$0xff]
        %v304 = vld [vmem:[%s266 + $0x60] sm:$0xff]
        %v305 = vld [vmem:[%s266 + $0x70] sm:$0xff]
        %s306 = scalar_lea.vmem %s266, 8 [#allocation6]
        %v307 = vld [vmem:[%s306] sm:$0xff]
        %v308 = vld [vmem:[%s306 + $0x10] sm:$0xff]
        %v309 = vld [vmem:[%s306 + $0x20] sm:$0xff]
        %v310 = vld [vmem:[%s306 + $0x30] sm:$0xff]
        %v311 = vld [vmem:[%s306 + $0x40] sm:$0xff]
        %v312 = vld [vmem:[%s306 + $0x50] sm:$0xff]
        %v313 = vld [vmem:[%s306 + $0x60] sm:$0xff]
        %v314 = vld [vmem:[%s306 + $0x70] sm:$0xff]
        %323 = vrot.lane.b32.xlu0 %v298, 124
        %v324 = vpop.permute.xlu0 %323
        %325 = vrot.lane.b32.xlu0 %v299, 124
        %v326 = vpop.permute.xlu0 %325
        %327 = vrot.lane.b32.xlu0 %v300, 124
        %v328 = vpop.permute.xlu0 %327
        %329 = vrot.lane.b32.xlu0 %v301, 124
        %v330 = vpop.permute.xlu0 %329
        %331 = vrot.lane.b32.xlu0 %v302, 124
        %v332 = vpop.permute.xlu0 %331
        %333 = vrot.lane.b32.xlu0 %v303, 124
        %v334 = vpop.permute.xlu0 %333
        %335 = vrot.lane.b32.xlu0 %v304, 124
        %v336 = vpop.permute.xlu0 %335
        %337 = vrot.lane.b32.xlu0 %v305, 124
        %v338 = vpop.permute.xlu0 %337
        %v347 = vmax.f32 %v298, %v324
        %v348 = vmax.f32 %v299, %v326
        %v349 = vmax.f32 %v300, %v328
        %v350 = vmax.f32 %v301, %v330
        %v351 = vmax.f32 %v302, %v332
        %v352 = vmax.f32 %v303, %v334
        %v353 = vmax.f32 %v304, %v336
        %v354 = vmax.f32 %v305, %v338
        %363 = vrot.lane.b32.xlu0 %v307, 124
        %v364 = vpop.permute.xlu0 %363
        %365 = vrot.lane.b32.xlu0 %v308, 124
        %v366 = vpop.permute.xlu0 %365
        %367 = vrot.lane.b32.xlu0 %v309, 124
        %v368 = vpop.permute.xlu0 %367
        %369 = vrot.lane.b32.xlu0 %v310, 124
        %v370 = vpop.permute.xlu0 %369
        %371 = vrot.lane.b32.xlu0 %v311, 124
        %v372 = vpop.permute.xlu0 %371
        %373 = vrot.lane.b32.xlu0 %v312, 124
        %v374 = vpop.permute.xlu0 %373
        %375 = vrot.lane.b32.xlu0 %v313, 124
        %v376 = vpop.permute.xlu0 %375
        %377 = vrot.lane.b32.xlu0 %v314, 124
        %v378 = vpop.permute.xlu0 %377
        %v387 = vmax.f32 %v307, %v364
        %v388 = vmax.f32 %v308, %v366
        %v389 = vmax.f32 %v309, %v368
        %v390 = vmax.f32 %v310, %v370
        %v391 = vmax.f32 %v311, %v372
        %v392 = vmax.f32 %v312, %v374
        %v393 = vmax.f32 %v313, %v376
        %v394 = vmax.f32 %v314, %v378
        %v395 = vmax.f32 %v347, %v387
        %v396 = vmax.f32 %v348, %v388
        %v397 = vmax.f32 %v349, %v389
        %v398 = vmax.f32 %v350, %v390
        %v399 = vmax.f32 %v351, %v391
        %v400 = vmax.f32 %v352, %v392
        %v401 = vmax.f32 %v353, %v393
        %v402 = vmax.f32 %v354, %v394
        %vm403 = vcmask 31744
        %404 = vst.msk [vmem:[#allocation2] sm:$0xff] %vm403, 0.0
        %vm405 = vcmask 25600
        %406 = vst.msk [vmem:[#allocation2 + $0x8] sm:$0x3] %vm405, 0.0
        %407 = vst.msk [vmem:[#allocation2 + $0x10] sm:$0xff] %vm403, 0.0
        %408 = vst.msk [vmem:[#allocation2 + $0x18] sm:$0x3] %vm405, 0.0
        %409 = vst.msk [vmem:[#allocation2 + $0x20] sm:$0xff] %vm403, 0.0
        %410 = vst.msk [vmem:[#allocation2 + $0x28] sm:$0x3] %vm405, 0.0
        %411 = vst.msk [vmem:[#allocation2 + $0x30] sm:$0xff] %vm403, 0.0
        %412 = vst.msk [vmem:[#allocation2 + $0x38] sm:$0x3] %vm405, 0.0
        %413 = vst.msk [vmem:[#allocation2 + $0x40] sm:$0xff] %vm403, 0.0
        %414 = vst.msk [vmem:[#allocation2 + $0x48] sm:$0x3] %vm405, 0.0
        %415 = vst.msk [vmem:[#allocation2 + $0x50] sm:$0xff] %vm403, 0.0
        %416 = vst.msk [vmem:[#allocation2 + $0x58] sm:$0x3] %vm405, 0.0
        %417 = vst.msk [vmem:[#allocation2 + $0x60] sm:$0xff] %vm403, 0.0
        %418 = vst.msk [vmem:[#allocation2 + $0x68] sm:$0x3] %vm405, 0.0
        %419 = vst.msk [vmem:[#allocation2 + $0x70] sm:$0xff] %vm403, 0.0
        %420 = vst.msk [vmem:[#allocation2 + $0x78] sm:$0x3] %vm405, 0.0
        %421 = vst.msk [vmem:[#allocation2 + $0x80] sm:$0xff] %vm403, 0.0
        %422 = vst.msk [vmem:[#allocation2 + $0x88] sm:$0x3] %vm405, 0.0
        %423 = vst.msk [vmem:[#allocation2 + $0x90] sm:$0xff] %vm403, 0.0
        %424 = vst.msk [vmem:[#allocation2 + $0x98] sm:$0x3] %vm405, 0.0
        %s425 = scalar_lea.vmem [#allocation2], 16
        %426 = vst.msk [vmem:[%s425 + $0x1] sm:$0xff] %vm403, %v395
        %427 = vst.msk [vmem:[%s425 + $0x11] sm:$0xff] %vm403, %v396
        %428 = vst.msk [vmem:[%s425 + $0x21] sm:$0xff] %vm403, %v397
        %429 = vst.msk [vmem:[%s425 + $0x31] sm:$0xff] %vm403, %v398
        %430 = vst.msk [vmem:[%s425 + $0x41] sm:$0xff] %vm403, %v399
        %431 = vst.msk [vmem:[%s425 + $0x51] sm:$0xff] %vm403, %v400
        %432 = vst.msk [vmem:[%s425 + $0x61] sm:$0xff] %vm403, %v401
        %433 = vst.msk [vmem:[%s425 + $0x71] sm:$0xff] %vm403, %v402
        %v434 = vld [vmem:[#allocation2] sm:$0xff]
        %v435 = vld [vmem:[#allocation2 + $0x10] sm:$0xff]
        %v436 = vld [vmem:[#allocation2 + $0x20] sm:$0xff]
        %v437 = vld [vmem:[#allocation2 + $0x30] sm:$0xff]
        %v438 = vld [vmem:[#allocation2 + $0x40] sm:$0xff]
        %v439 = vld [vmem:[#allocation2 + $0x50] sm:$0xff]
        %v440 = vld [vmem:[#allocation2 + $0x60] sm:$0xff]
        %v441 = vld [vmem:[#allocation2 + $0x70] sm:$0xff]
        %v442 = vpack.c.bf16 %v435, %v434
        %v443 = vpack.c.bf16 %v437, %v436
        %v444 = vpack.c.bf16 %v439, %v438
        %v445 = vpack.c.bf16 %v441, %v440
        %446 = vst.msk [vmem:[#allocation3] sm:$0xff] %vm403, %v442
        %447 = vst.msk [vmem:[#allocation3 + $0x8] sm:$0xff] %vm403, %v443
        %448 = vst.msk [vmem:[#allocation3 + $0x10] sm:$0xff] %vm403, %v444
        %449 = vst.msk [vmem:[#allocation3 + $0x18] sm:$0xff] %vm403, %v445
        %v450 = vld [vmem:[#allocation2 + $0x1] sm:$0xff]
        %v451 = vld [vmem:[#allocation2 + $0x11] sm:$0xff]
        %v452 = vld [vmem:[#allocation2 + $0x21] sm:$0xff]
        %v453 = vld [vmem:[#allocation2 + $0x31] sm:$0xff]
        %v454 = vld [vmem:[#allocation2 + $0x41] sm:$0xff]
        %v455 = vld [vmem:[#allocation2 + $0x51] sm:$0xff]
        %v456 = vld [vmem:[#allocation2 + $0x61] sm:$0xff]
        %v457 = vld [vmem:[#allocation2 + $0x71] sm:$0xff]
        %v458 = vpack.c.bf16 %v451, %v450
        %v459 = vpack.c.bf16 %v453, %v452
        %v460 = vpack.c.bf16 %v455, %v454
        %v461 = vpack.c.bf16 %v457, %v456
        %466 = vrot.lane.b32.xlu0 %v458, 4
        %v467 = vpop.permute.xlu0 %466
        %468 = vrot.lane.b32.xlu0 %v459, 4
        %v469 = vpop.permute.xlu0 %468
        %470 = vrot.lane.b32.xlu0 %v460, 4
        %v471 = vpop.permute.xlu0 %470
        %472 = vrot.lane.b32.xlu0 %v461, 4
        %v473 = vpop.permute.xlu0 %472
        %vm478 = vcmask 64544
        %479 = vst.msk [vmem:[#allocation3] sm:$0xff] %vm478, %v467
        %480 = vst.msk [vmem:[#allocation3 + $0x8] sm:$0xff] %vm478, %v469
        %481 = vst.msk [vmem:[#allocation3 + $0x10] sm:$0xff] %vm478, %v471
        %482 = vst.msk [vmem:[#allocation3 + $0x18] sm:$0xff] %vm478, %v473
        %v483 = vld [vmem:[#allocation2 + $0x2] sm:$0xff]
        %v484 = vld [vmem:[#allocation2 + $0x12] sm:$0xff]
        %v485 = vld [vmem:[#allocation2 + $0x22] sm:$0xff]
        %v486 = vld [vmem:[#allocation2 + $0x32] sm:$0xff]
        %v487 = vld [vmem:[#allocation2 + $0x42] sm:$0xff]
        %v488 = vld [vmem:[#allocation2 + $0x52] sm:$0xff]
        %v489 = vld [vmem:[#allocation2 + $0x62] sm:$0xff]
        %v490 = vld [vmem:[#allocation2 + $0x72] sm:$0xff]
        %v491 = vpack.c.bf16 %v484, %v483
        %v492 = vpack.c.bf16 %v486, %v485
        %v493 = vpack.c.bf16 %v488, %v487
        %v494 = vpack.c.bf16 %v490, %v489
        %499 = vrot.lane.b32.xlu0 %v491, 8
        %v500 = vpop.permute.xlu0 %499
        %501 = vrot.lane.b32.xlu0 %v492, 8
        %v502 = vpop.permute.xlu0 %501
        %503 = vrot.lane.b32.xlu0 %v493, 8
        %v504 = vpop.permute.xlu0 %503
        %505 = vrot.lane.b32.xlu0 %v494, 8
        %v506 = vpop.permute.xlu0 %505
        %vm511 = vcmask 97344
        %512 = vst.msk [vmem:[#allocation3] sm:$0xff] %vm511, %v500
        %513 = vst.msk [vmem:[#allocation3 + $0x8] sm:$0xff] %vm511, %v502
        %514 = vst.msk [vmem:[#allocation3 + $0x10] sm:$0xff] %vm511, %v504
        %515 = vst.msk [vmem:[#allocation3 + $0x18] sm:$0xff] %vm511, %v506
        %v516 = vld [vmem:[%s425] sm:$0xff]
        %v517 = vld [vmem:[%s425 + $0x10] sm:$0xff]
        %v518 = vld [vmem:[%s425 + $0x20] sm:$0xff]
        %v519 = vld [vmem:[%s425 + $0x30] sm:$0xff]
        %v520 = vld [vmem:[%s425 + $0x40] sm:$0xff]
        %v521 = vld [vmem:[%s425 + $0x50] sm:$0xff]
        %v522 = vld [vmem:[%s425 + $0x60] sm:$0xff]
        %v523 = vld [vmem:[%s425 + $0x70] sm:$0xff]
        %v524 = vpack.c.bf16 %v517, %v516
        %v525 = vpack.c.bf16 %v519, %v518
        %v526 = vpack.c.bf16 %v521, %v520
        %v527 = vpack.c.bf16 %v523, %v522
        %532 = vrot.lane.b32.xlu0 %v524, 12
        %v533 = vpop.permute.xlu0 %532
        %534 = vrot.lane.b32.xlu0 %v525, 12
        %v535 = vpop.permute.xlu0 %534
        %536 = vrot.lane.b32.xlu0 %v526, 12
        %v537 = vpop.permute.xlu0 %536
        %538 = vrot.lane.b32.xlu0 %v527, 12
        %v539 = vpop.permute.xlu0 %538
        %vm544 = vcmask 130144
        %545 = vst.msk [vmem:[#allocation3] sm:$0xff] %vm544, %v533
        %546 = vst.msk [vmem:[#allocation3 + $0x8] sm:$0xff] %vm544, %v535
        %547 = vst.msk [vmem:[#allocation3 + $0x10] sm:$0xff] %vm544, %v537
        %548 = vst.msk [vmem:[#allocation3 + $0x18] sm:$0xff] %vm544, %v539
        %v549 = vld [vmem:[%s425 + $0x1] sm:$0xff]
        %v550 = vld [vmem:[%s425 + $0x11] sm:$0xff]
        %v551 = vld [vmem:[%s425 + $0x21] sm:$0xff]
        %v552 = vld [vmem:[%s425 + $0x31] sm:$0xff]
        %v553 = vld [vmem:[%s425 + $0x41] sm:$0xff]
        %v554 = vld [vmem:[%s425 + $0x51] sm:$0xff]
        %v555 = vld [vmem:[%s425 + $0x61] sm:$0xff]
        %v556 = vld [vmem:[%s425 + $0x71] sm:$0xff]
        %v557 = vpack.c.bf16 %v550, %v549
        %v558 = vpack.c.bf16 %v552, %v551
        %v559 = vpack.c.bf16 %v554, %v553
        %v560 = vpack.c.bf16 %v556, %v555
        %565 = vrot.lane.b32.xlu0 %v557, 16
        %v566 = vpop.permute.xlu0 %565
        %567 = vrot.lane.b32.xlu0 %v558, 16
        %v568 = vpop.permute.xlu0 %567
        %569 = vrot.lane.b32.xlu0 %v559, 16
        %v570 = vpop.permute.xlu0 %569
        %571 = vrot.lane.b32.xlu0 %v560, 16
        %v572 = vpop.permute.xlu0 %571
        %vm577 = vcmask 162944
        %578 = vst.msk [vmem:[#allocation3] sm:$0xff] %vm577, %v566
        %579 = vst.msk [vmem:[#allocation3 + $0x8] sm:$0xff] %vm577, %v568
        %580 = vst.msk [vmem:[#allocation3 + $0x10] sm:$0xff] %vm577, %v570
        %581 = vst.msk [vmem:[#allocation3 + $0x18] sm:$0xff] %vm577, %v572
        %v582 = vld [vmem:[%s425 + $0x2] sm:$0xff]
        %v583 = vld [vmem:[%s425 + $0x12] sm:$0xff]
        %v584 = vld [vmem:[%s425 + $0x22] sm:$0xff]
        %v585 = vld [vmem:[%s425 + $0x32] sm:$0xff]
        %v586 = vld [vmem:[%s425 + $0x42] sm:$0xff]
        %v587 = vld [vmem:[%s425 + $0x52] sm:$0xff]
        %v588 = vld [vmem:[%s425 + $0x62] sm:$0xff]
        %v589 = vld [vmem:[%s425 + $0x72] sm:$0xff]
        %v590 = vpack.c.bf16 %v583, %v582
        %v591 = vpack.c.bf16 %v585, %v584
        %v592 = vpack.c.bf16 %v587, %v586
        %v593 = vpack.c.bf16 %v589, %v588
        %598 = vrot.lane.b32.xlu0 %v590, 20
        %v599 = vpop.permute.xlu0 %598
        %600 = vrot.lane.b32.xlu0 %v591, 20
        %v601 = vpop.permute.xlu0 %600
        %602 = vrot.lane.b32.xlu0 %v592, 20
        %v603 = vpop.permute.xlu0 %602
        %604 = vrot.lane.b32.xlu0 %v593, 20
        %v605 = vpop.permute.xlu0 %604
        %vm610 = vcmask 195744
        %611 = vst.msk [vmem:[#allocation3] sm:$0xff] %vm610, %v599
        %612 = vst.msk [vmem:[#allocation3 + $0x8] sm:$0xff] %vm610, %v601
        %613 = vst.msk [vmem:[#allocation3 + $0x10] sm:$0xff] %vm610, %v603
        %614 = vst.msk [vmem:[#allocation3 + $0x18] sm:$0xff] %vm610, %v605
        %s615 = scalar_lea.vmem [#allocation2], 32
        %v616 = vld [vmem:[%s615] sm:$0xff]
        %v617 = vld [vmem:[%s615 + $0x10] sm:$0xff]
        %v618 = vld [vmem:[%s615 + $0x20] sm:$0xff]
        %v619 = vld [vmem:[%s615 + $0x30] sm:$0xff]
        %v620 = vld [vmem:[%s615 + $0x40] sm:$0xff]
        %v621 = vld [vmem:[%s615 + $0x50] sm:$0xff]
        %v622 = vld [vmem:[%s615 + $0x60] sm:$0xff]
        %v623 = vld [vmem:[%s615 + $0x70] sm:$0xff]
        %v624 = vpack.c.bf16 %v617, %v616
        %v625 = vpack.c.bf16 %v619, %v618
        %v626 = vpack.c.bf16 %v621, %v620
        %v627 = vpack.c.bf16 %v623, %v622
        %632 = vrot.lane.b32.xlu0 %v624, 24
        %v633 = vpop.permute.xlu0 %632
        %634 = vrot.lane.b32.xlu0 %v625, 24
        %v635 = vpop.permute.xlu0 %634
        %636 = vrot.lane.b32.xlu0 %v626, 24
        %v637 = vpop.permute.xlu0 %636
        %638 = vrot.lane.b32.xlu0 %v627, 24
        %v639 = vpop.permute.xlu0 %638
        %vm644 = vcmask 228544
        %645 = vst.msk [vmem:[#allocation3] sm:$0xff] %vm644, %v633
        %646 = vst.msk [vmem:[#allocation3 + $0x8] sm:$0xff] %vm644, %v635
        %647 = vst.msk [vmem:[#allocation3 + $0x10] sm:$0xff] %vm644, %v637
        %648 = vst.msk [vmem:[#allocation3 + $0x18] sm:$0xff] %vm644, %v639
        %v649 = vld [vmem:[%s615 + $0x1] sm:$0xff]
        %v650 = vld [vmem:[%s615 + $0x11] sm:$0xff]
        %v651 = vld [vmem:[%s615 + $0x21] sm:$0xff]
        %v652 = vld [vmem:[%s615 + $0x31] sm:$0xff]
        %v653 = vld [vmem:[%s615 + $0x41] sm:$0xff]
        %v654 = vld [vmem:[%s615 + $0x51] sm:$0xff]
        %v655 = vld [vmem:[%s615 + $0x61] sm:$0xff]
        %v656 = vld [vmem:[%s615 + $0x71] sm:$0xff]
        %v657 = vpack.c.bf16 %v650, %v649
        %v658 = vpack.c.bf16 %v652, %v651
        %v659 = vpack.c.bf16 %v654, %v653
        %v660 = vpack.c.bf16 %v656, %v655
        %665 = vrot.lane.b32.xlu0 %v657, 28
        %v666 = vpop.permute.xlu0 %665
        %667 = vrot.lane.b32.xlu0 %v658, 28
        %v668 = vpop.permute.xlu0 %667
        %669 = vrot.lane.b32.xlu0 %v659, 28
        %v670 = vpop.permute.xlu0 %669
        %671 = vrot.lane.b32.xlu0 %v660, 28
        %v672 = vpop.permute.xlu0 %671
        %vm677 = vcmask 261344
        %678 = vst.msk [vmem:[#allocation3] sm:$0xff] %vm677, %v666
        %679 = vst.msk [vmem:[#allocation3 + $0x8] sm:$0xff] %vm677, %v668
        %680 = vst.msk [vmem:[#allocation3 + $0x10] sm:$0xff] %vm677, %v670
        %681 = vst.msk [vmem:[#allocation3 + $0x18] sm:$0xff] %vm677, %v672
        %v682 = vld [vmem:[%s615 + $0x2] sm:$0xff]
        %v683 = vld [vmem:[%s615 + $0x12] sm:$0xff]
        %v684 = vld [vmem:[%s615 + $0x22] sm:$0xff]
        %v685 = vld [vmem:[%s615 + $0x32] sm:$0xff]
        %v686 = vld [vmem:[%s615 + $0x42] sm:$0xff]
        %v687 = vld [vmem:[%s615 + $0x52] sm:$0xff]
        %v688 = vld [vmem:[%s615 + $0x62] sm:$0xff]
        %v689 = vld [vmem:[%s615 + $0x72] sm:$0xff]
        %v690 = vpack.c.bf16 %v683, %v682
        %v691 = vpack.c.bf16 %v685, %v684
        %v692 = vpack.c.bf16 %v687, %v686
        %v693 = vpack.c.bf16 %v689, %v688
        %698 = vrot.lane.b32.xlu0 %v690, 32
        %v699 = vpop.permute.xlu0 %698
        %700 = vrot.lane.b32.xlu0 %v691, 32
        %v701 = vpop.permute.xlu0 %700
        %702 = vrot.lane.b32.xlu0 %v692, 32
        %v703 = vpop.permute.xlu0 %702
        %704 = vrot.lane.b32.xlu0 %v693, 32
        %v705 = vpop.permute.xlu0 %704
        %vm710 = vcmask 294144
        %711 = vst.msk [vmem:[#allocation3] sm:$0xff] %vm710, %v699
        %712 = vst.msk [vmem:[#allocation3 + $0x8] sm:$0xff] %vm710, %v701
        %713 = vst.msk [vmem:[#allocation3 + $0x10] sm:$0xff] %vm710, %v703
        %714 = vst.msk [vmem:[#allocation3 + $0x18] sm:$0xff] %vm710, %v705
        %v715 = vld [vmem:[#allocation3] sm:$0xff]
        %v716 = vld [vmem:[#allocation3 + $0x8] sm:$0xff]
        %v717 = vld [vmem:[#allocation3 + $0x10] sm:$0xff]
        %v718 = vld [vmem:[#allocation3 + $0x18] sm:$0xff]
        %v719 = vld [vmem:[%s1] sm:$0xf]
        %v720 = vld [vmem:[%s1 + $0x4] sm:$0xf]
        %v721 = vld [vmem:[%s1 + $0x8] sm:$0xf]
        %v722 = vld [vmem:[%s1 + $0xc] sm:$0xf]
        %v723 = vld [vmem:[%s1 + $0x10] sm:$0x3]
        %v729 = vunpack.c.l.b16 %v719
        %v730 = vunpack.c.l.b16 %v720
        %v731 = vunpack.c.l.b16 %v721
        %v732 = vunpack.c.l.b16 %v722
        %v733 = vunpack.c.l.b16 %v723
        %v734 = vpack.c.b16 %v730, %v729
        %v735 = vpack.c.b16 %v732, %v731
        %v736 = vpack.c.b16 %v733, %v733
        %vm739 = vcmask 293888
        %v741 = vsel %vm739, %v715, 0
        %v744 = vsel %vm739, %v716, 0
        %v747 = vsel %vm739, %v717, 0
        %v750 = vsel %vm739, %v718, 0
        %vm752 = vcmask 1041408
        %v754 = vsel %vm752, %v736, 0
        %756 = vmatprep.subr.bf16.mxu0 0
        %757 = vmatpush1.bf16.msra.mxu0 %v734
        %758 = vmatprep.subr.bf16.mxu0 0
        %759 = vmatpush1.bf16.msra.mxu0 %v735
        %760 = vmatprep.subr.bf16.mxu0 0
        %761 = vmatpush1.bf16.msra.mxu0 %v754
        %762 = vmatprep.subr.bf16.mxu0 0
        %763 = vmatpush1.bf16.msra.mxu0 0
        %764 = vmatprep.subr.bf16.mxu0 0
        %765 = vmatpush1.bf16.msra.mxu0 0
        %766 = vmatprep.subr.bf16.mxu0 0
        %767 = vmatpush1.bf16.msra.mxu0 0
        %768 = vmatprep.subr.bf16.mxu0 0
        %769 = vmatpush1.bf16.msra.mxu0 0
        %770 = vmatprep.subr.bf16.mxu0 0
        %771 = vmatpush1.bf16.msra.mxu0 0
        %772 = vmatprep.subr.bf16.mxu0 0
        %773 = vmatpush1.bf16.msra.mxu0 0
        %774 = vmatprep.subr.bf16.mxu0 0
        %775 = vmatpush1.bf16.msra.mxu0 0
        %776 = vmatprep.subr.bf16.mxu0 0
        %777 = vmatpush1.bf16.msra.mxu0 0
        %778 = vmatprep.subr.bf16.mxu0 0
        %779 = vmatpush1.bf16.msra.mxu0 0
        %780 = vmatprep.subr.bf16.mxu0 0
        %781 = vmatpush1.bf16.msra.mxu0 0
        %782 = vmatprep.subr.bf16.mxu0 0
        %783 = vmatpush1.bf16.msra.mxu0 0
        %784 = vmatprep.subr.bf16.mxu0 0
        %785 = vmatpush1.bf16.msra.mxu0 0
        %786 = vmatprep.subr.bf16.mxu0 0
        %787 = vmatpush1.bf16.msra.mxu0 0
        %788 = vmatprep.mubr.bf16.mxu0 0
        %789 = vmatmul.mubr.bf16.gmra.mrb[0].mxu0 %v741
        %v790 = vpop.f32.mrb[0].mxu0
        %v791 = vadd.f32 0.0, %v790
        %v792 = vpop.f32.mrb[0].mxu0
        %v793 = vpop.f32.mrb[0].mxu0
        %v794 = vadd.f32 0.0, %v793
        %v795 = vpop.f32.mrb[0].mxu0
        %796 = vmatprep.mubr.bf16.mxu0 0
        %797 = vmatmul.mubr.bf16.gmra.mrb[0].mxu0 %v744
        %v798 = vpop.f32.mrb[0].mxu0
        %v799 = vadd.f32 0.0, %v798
        %v800 = vpop.f32.mrb[0].mxu0
        %v801 = vpop.f32.mrb[0].mxu0
        %v802 = vadd.f32 0.0, %v801
        %v803 = vpop.f32.mrb[0].mxu0
        %804 = vmatprep.mubr.bf16.mxu0 0
        %805 = vmatmul.mubr.bf16.gmra.mrb[0].mxu0 %v747
        %v806 = vpop.f32.mrb[0].mxu0
        %v807 = vadd.f32 0.0, %v806
        %v808 = vpop.f32.mrb[0].mxu0
        %v809 = vpop.f32.mrb[0].mxu0
        %v810 = vadd.f32 0.0, %v809
        %v811 = vpop.f32.mrb[0].mxu0
        %812 = vmatprep.mubr.bf16.mxu0 0
        %813 = vmatmul.mubr.bf16.gmra.mrb[0].mxu0 %v750
        %v814 = vpop.f32.mrb[0].mxu0
        %v815 = vadd.f32 0.0, %v814
        %v816 = vpop.f32.mrb[0].mxu0
        %v817 = vpop.f32.mrb[0].mxu0
        %v818 = vadd.f32 0.0, %v817
        %v819 = vpop.f32.mrb[0].mxu0
        %820 = vdwg.mxu0
        %v821 = vld [vmem:[%s2] sm:$0x1]
        %v823 = vlaneseq
        %v824 = vshrl.u32 %v823, 7
        %v825 = vsub.s32 0, %v824
        %v826 = vrot.slane %v821, %v825
        %v828 = vmul.f32 %v791, %v826
        %v829 = vmul.f32 %v794, %v826
        %v830 = vmul.f32 %v799, %v826
        %v831 = vmul.f32 %v802, %v826
        %v832 = vmul.f32 %v807, %v826
        %v833 = vmul.f32 %v810, %v826
        %v834 = vmul.f32 %v815, %v826
        %v835 = vmul.f32 %v818, %v826
        %v836 = vld [vmem:[%s3] sm:$0x1]
        %v838 = vlaneseq
        %v839 = vshrl.u32 %v838, 7
        %v840 = vsub.s32 0, %v839
        %v841 = vrot.slane %v836, %v840
        %v843 = vadd.f32 %v828, %v841
        %v844 = vadd.f32 %v829, %v841
        %v845 = vadd.f32 %v830, %v841
        %v846 = vadd.f32 %v831, %v841
        %v847 = vadd.f32 %v832, %v841
        %v848 = vadd.f32 %v833, %v841
        %v849 = vadd.f32 %v834, %v841
        %v850 = vadd.f32 %v835, %v841
        %v851 = vmax.f32 %v843, 0.0
        %v852 = vmax.f32 %v844, 0.0
        %v853 = vmax.f32 %v845, 0.0
        %v854 = vmax.f32 %v846, 0.0
        %v855 = vmax.f32 %v847, 0.0
        %v856 = vmax.f32 %v848, 0.0
        %v857 = vmax.f32 %v849, 0.0
        %v858 = vmax.f32 %v850, 0.0
        %vm859 = vcmask 64512
        %860 = vst.msk [vmem:[#allocation4] sm:$0xff] %vm859, 0.0
        %vm861 = vcmask 58368
        %862 = vst.msk [vmem:[#allocation4 + $0x8] sm:$0x3] %vm861, 0.0
        %863 = vst.msk [vmem:[#allocation4 + $0x10] sm:$0xff] %vm859, 0.0
        %864 = vst.msk [vmem:[#allocation4 + $0x18] sm:$0x3] %vm861, 0.0
        %865 = vst.msk [vmem:[#allocation4 + $0x20] sm:$0xff] %vm859, 0.0
        %866 = vst.msk [vmem:[#allocation4 + $0x28] sm:$0x3] %vm861, 0.0
        %867 = vst.msk [vmem:[#allocation4 + $0x30] sm:$0xff] %vm859, 0.0
        %868 = vst.msk [vmem:[#allocation4 + $0x38] sm:$0x3] %vm861, 0.0
        %869 = vst.msk [vmem:[#allocation4 + $0x40] sm:$0xff] %vm859, 0.0
        %870 = vst.msk [vmem:[#allocation4 + $0x48] sm:$0x3] %vm861, 0.0
        %871 = vst.msk [vmem:[#allocation4 + $0x50] sm:$0xff] %vm859, 0.0
        %872 = vst.msk [vmem:[#allocation4 + $0x58] sm:$0x3] %vm861, 0.0
        %873 = vst.msk [vmem:[#allocation4 + $0x60] sm:$0xff] %vm859, 0.0
        %874 = vst.msk [vmem:[#allocation4 + $0x68] sm:$0x3] %vm861, 0.0
        %875 = vst.msk [vmem:[#allocation4 + $0x70] sm:$0xff] %vm859, 0.0
        %876 = vst.msk [vmem:[#allocation4 + $0x78] sm:$0x3] %vm861, 0.0
        %877 = vst.msk [vmem:[#allocation4 + $0x80] sm:$0xff] %vm859, 0.0
        %878 = vst.msk [vmem:[#allocation4 + $0x88] sm:$0x3] %vm861, 0.0
        %879 = vst.msk [vmem:[#allocation4 + $0x90] sm:$0xff] %vm859, 0.0
        %880 = vst.msk [vmem:[#allocation4 + $0x98] sm:$0x3] %vm861, 0.0
        %s881 = scalar_lea.vmem [#allocation4], 16
        %882 = vst.msk [vmem:[%s881 + $0x1] sm:$0xff] %vm859, %v851
        %883 = vst.msk [vmem:[%s881 + $0x11] sm:$0xff] %vm859, %v852
        %884 = vst.msk [vmem:[%s881 + $0x21] sm:$0xff] %vm859, %v853
        %885 = vst.msk [vmem:[%s881 + $0x31] sm:$0xff] %vm859, %v854
        %886 = vst.msk [vmem:[%s881 + $0x41] sm:$0xff] %vm859, %v855
        %887 = vst.msk [vmem:[%s881 + $0x51] sm:$0xff] %vm859, %v856
        %888 = vst.msk [vmem:[%s881 + $0x61] sm:$0xff] %vm859, %v857
        %889 = vst.msk [vmem:[%s881 + $0x71] sm:$0xff] %vm859, %v858
        %v890 = vld [vmem:[#allocation4] sm:$0xff]
        %v891 = vld [vmem:[#allocation4 + $0x10] sm:$0xff]
        %v892 = vld [vmem:[#allocation4 + $0x20] sm:$0xff]
        %v893 = vld [vmem:[#allocation4 + $0x30] sm:$0xff]
        %v894 = vld [vmem:[#allocation4 + $0x40] sm:$0xff]
        %v895 = vld [vmem:[#allocation4 + $0x50] sm:$0xff]
        %v896 = vld [vmem:[#allocation4 + $0x60] sm:$0xff]
        %v897 = vld [vmem:[#allocation4 + $0x70] sm:$0xff]
        %v898 = vpack.c.bf16 %v891, %v890
        %v899 = vpack.c.bf16 %v893, %v892
        %v900 = vpack.c.bf16 %v895, %v894
        %v901 = vpack.c.bf16 %v897, %v896
        %902 = vst.msk [vmem:[#allocation5] sm:$0xff] %vm859, %v898
        %903 = vst.msk [vmem:[#allocation5 + $0x8] sm:$0xff] %vm859, %v899
        %904 = vst.msk [vmem:[#allocation5 + $0x10] sm:$0xff] %vm859, %v900
        %905 = vst.msk [vmem:[#allocation5 + $0x18] sm:$0xff] %vm859, %v901
        %v906 = vld [vmem:[#allocation4 + $0x1] sm:$0xff]
        %v907 = vld [vmem:[#allocation4 + $0x11] sm:$0xff]
        %v908 = vld [vmem:[#allocation4 + $0x21] sm:$0xff]
        %v909 = vld [vmem:[#allocation4 + $0x31] sm:$0xff]
        %v910 = vld [vmem:[#allocation4 + $0x41] sm:$0xff]
        %v911 = vld [vmem:[#allocation4 + $0x51] sm:$0xff]
        %v912 = vld [vmem:[#allocation4 + $0x61] sm:$0xff]
        %v913 = vld [vmem:[#allocation4 + $0x71] sm:$0xff]
        %v914 = vpack.c.bf16 %v907, %v906
        %v915 = vpack.c.bf16 %v909, %v908
        %v916 = vpack.c.bf16 %v911, %v910
        %v917 = vpack.c.bf16 %v913, %v912
        %922 = vrot.lane.b32.xlu0 %v914, 8
        %v923 = vpop.permute.xlu0 %922
        %924 = vrot.lane.b32.xlu0 %v915, 8
        %v925 = vpop.permute.xlu0 %924
        %926 = vrot.lane.b32.xlu0 %v916, 8
        %v927 = vpop.permute.xlu0 %926
        %928 = vrot.lane.b32.xlu0 %v917, 8
        %v929 = vpop.permute.xlu0 %928
        %vm934 = vcmask 130112
        %935 = vst.msk [vmem:[#allocation5] sm:$0xff] %vm934, %v923
        %936 = vst.msk [vmem:[#allocation5 + $0x8] sm:$0xff] %vm934, %v925
        %937 = vst.msk [vmem:[#allocation5 + $0x10] sm:$0xff] %vm934, %v927
        %938 = vst.msk [vmem:[#allocation5 + $0x18] sm:$0xff] %vm934, %v929
        %v939 = vld [vmem:[#allocation4 + $0x2] sm:$0xff]
        %v940 = vld [vmem:[#allocation4 + $0x12] sm:$0xff]
        %v941 = vld [vmem:[#allocation4 + $0x22] sm:$0xff]
        %v942 = vld [vmem:[#allocation4 + $0x32] sm:$0xff]
        %v943 = vld [vmem:[#allocation4 + $0x42] sm:$0xff]
        %v944 = vld [vmem:[#allocation4 + $0x52] sm:$0xff]
        %v945 = vld [vmem:[#allocation4 + $0x62] sm:$0xff]
        %v946 = vld [vmem:[#allocation4 + $0x72] sm:$0xff]
        %v947 = vpack.c.bf16 %v940, %v939
        %v948 = vpack.c.bf16 %v942, %v941
        %v949 = vpack.c.bf16 %v944, %v943
        %v950 = vpack.c.bf16 %v946, %v945
        %955 = vrot.lane.b32.xlu0 %v947, 16
        %v956 = vpop.permute.xlu0 %955
        %957 = vrot.lane.b32.xlu0 %v948, 16
        %v958 = vpop.permute.xlu0 %957
        %959 = vrot.lane.b32.xlu0 %v949, 16
        %v960 = vpop.permute.xlu0 %959
        %961 = vrot.lane.b32.xlu0 %v950, 16
        %v962 = vpop.permute.xlu0 %961
        %vm967 = vcmask 195712
        %968 = vst.msk [vmem:[#allocation5] sm:$0xff] %vm967, %v956
        %969 = vst.msk [vmem:[#allocation5 + $0x8] sm:$0xff] %vm967, %v958
        %970 = vst.msk [vmem:[#allocation5 + $0x10] sm:$0xff] %vm967, %v960
        %971 = vst.msk [vmem:[#allocation5 + $0x18] sm:$0xff] %vm967, %v962
        %v972 = vld [vmem:[%s881] sm:$0xff]
        %v973 = vld [vmem:[%s881 + $0x10] sm:$0xff]
        %v974 = vld [vmem:[%s881 + $0x20] sm:$0xff]
        %v975 = vld [vmem:[%s881 + $0x30] sm:$0xff]
        %v976 = vld [vmem:[%s881 + $0x40] sm:$0xff]
        %v977 = vld [vmem:[%s881 + $0x50] sm:$0xff]
        %v978 = vld [vmem:[%s881 + $0x60] sm:$0xff]
        %v979 = vld [vmem:[%s881 + $0x70] sm:$0xff]
        %v980 = vpack.c.bf16 %v973, %v972
        %v981 = vpack.c.bf16 %v975, %v974
        %v982 = vpack.c.bf16 %v977, %v976
        %v983 = vpack.c.bf16 %v979, %v978
        %988 = vrot.lane.b32.xlu0 %v980, 24
        %v989 = vpop.permute.xlu0 %988
        %990 = vrot.lane.b32.xlu0 %v981, 24
        %v991 = vpop.permute.xlu0 %990
        %992 = vrot.lane.b32.xlu0 %v982, 24
        %v993 = vpop.permute.xlu0 %992
        %994 = vrot.lane.b32.xlu0 %v983, 24
        %v995 = vpop.permute.xlu0 %994
        %vm1000 = vcmask 261312
        %1001 = vst.msk [vmem:[#allocation5] sm:$0xff] %vm1000, %v989
        %1002 = vst.msk [vmem:[#allocation5 + $0x8] sm:$0xff] %vm1000, %v991
        %1003 = vst.msk [vmem:[#allocation5 + $0x10] sm:$0xff] %vm1000, %v993
        %1004 = vst.msk [vmem:[#allocation5 + $0x18] sm:$0xff] %vm1000, %v995
        %v1005 = vld [vmem:[%s881 + $0x1] sm:$0xff]
        %v1006 = vld [vmem:[%s881 + $0x11] sm:$0xff]
        %v1007 = vld [vmem:[%s881 + $0x21] sm:$0xff]
        %v1008 = vld [vmem:[%s881 + $0x31] sm:$0xff]
        %v1009 = vld [vmem:[%s881 + $0x41] sm:$0xff]
        %v1010 = vld [vmem:[%s881 + $0x51] sm:$0xff]
        %v1011 = vld [vmem:[%s881 + $0x61] sm:$0xff]
        %v1012 = vld [vmem:[%s881 + $0x71] sm:$0xff]
        %v1013 = vpack.c.bf16 %v1006, %v1005
        %v1014 = vpack.c.bf16 %v1008, %v1007
        %v1015 = vpack.c.bf16 %v1010, %v1009
        %v1016 = vpack.c.bf16 %v1012, %v1011
        %1021 = vrot.lane.b32.xlu0 %v1013, 32
        %v1022 = vpop.permute.xlu0 %1021
        %1023 = vrot.lane.b32.xlu0 %v1014, 32
        %v1024 = vpop.permute.xlu0 %1023
        %1025 = vrot.lane.b32.xlu0 %v1015, 32
        %v1026 = vpop.permute.xlu0 %1025
        %1027 = vrot.lane.b32.xlu0 %v1016, 32
        %v1028 = vpop.permute.xlu0 %1027
        %vm1033 = vcmask 326912
        %1034 = vst.msk [vmem:[#allocation5] sm:$0xff] %vm1033, %v1022
        %1035 = vst.msk [vmem:[#allocation5 + $0x8] sm:$0xff] %vm1033, %v1024
        %1036 = vst.msk [vmem:[#allocation5 + $0x10] sm:$0xff] %vm1033, %v1026
        %1037 = vst.msk [vmem:[#allocation5 + $0x18] sm:$0xff] %vm1033, %v1028
        %v1038 = vld [vmem:[%s881 + $0x2] sm:$0xff]
        %v1039 = vld [vmem:[%s881 + $0x12] sm:$0xff]
        %v1040 = vld [vmem:[%s881 + $0x22] sm:$0xff]
        %v1041 = vld [vmem:[%s881 + $0x32] sm:$0xff]
        %v1042 = vld [vmem:[%s881 + $0x42] sm:$0xff]
        %v1043 = vld [vmem:[%s881 + $0x52] sm:$0xff]
        %v1044 = vld [vmem:[%s881 + $0x62] sm:$0xff]
        %v1045 = vld [vmem:[%s881 + $0x72] sm:$0xff]
        %v1046 = vpack.c.bf16 %v1039, %v1038
        %v1047 = vpack.c.bf16 %v1041, %v1040
        %v1048 = vpack.c.bf16 %v1043, %v1042
        %v1049 = vpack.c.bf16 %v1045, %v1044
        %1054 = vrot.lane.b32.xlu0 %v1046, 40
        %v1055 = vpop.permute.xlu0 %1054
        %1056 = vrot.lane.b32.xlu0 %v1047, 40
        %v1057 = vpop.permute.xlu0 %1056
        %1058 = vrot.lane.b32.xlu0 %v1048, 40
        %v1059 = vpop.permute.xlu0 %1058
        %1060 = vrot.lane.b32.xlu0 %v1049, 40
        %v1061 = vpop.permute.xlu0 %1060
        %vm1066 = vcmask 392512
        %1067 = vst.msk [vmem:[#allocation5] sm:$0xff] %vm1066, %v1055
        %1068 = vst.msk [vmem:[#allocation5 + $0x8] sm:$0xff] %vm1066, %v1057
        %1069 = vst.msk [vmem:[#allocation5 + $0x10] sm:$0xff] %vm1066, %v1059
        %1070 = vst.msk [vmem:[#allocation5 + $0x18] sm:$0xff] %vm1066, %v1061
        %s1071 = scalar_lea.vmem [#allocation4], 32
        %v1072 = vld [vmem:[%s1071] sm:$0xff]
        %v1073 = vld [vmem:[%s1071 + $0x10] sm:$0xff]
        %v1074 = vld [vmem:[%s1071 + $0x20] sm:$0xff]
        %v1075 = vld [vmem:[%s1071 + $0x30] sm:$0xff]
        %v1076 = vld [vmem:[%s1071 + $0x40] sm:$0xff]
        %v1077 = vld [vmem:[%s1071 + $0x50] sm:$0xff]
        %v1078 = vld [vmem:[%s1071 + $0x60] sm:$0xff]
        %v1079 = vld [vmem:[%s1071 + $0x70] sm:$0xff]
        %v1080 = vpack.c.bf16 %v1073, %v1072
        %v1081 = vpack.c.bf16 %v1075, %v1074
        %v1082 = vpack.c.bf16 %v1077, %v1076
        %v1083 = vpack.c.bf16 %v1079, %v1078
        %1088 = vrot.lane.b32.xlu0 %v1080, 48
        %v1089 = vpop.permute.xlu0 %1088
        %1090 = vrot.lane.b32.xlu0 %v1081, 48
        %v1091 = vpop.permute.xlu0 %1090
        %1092 = vrot.lane.b32.xlu0 %v1082, 48
        %v1093 = vpop.permute.xlu0 %1092
        %1094 = vrot.lane.b32.xlu0 %v1083, 48
        %v1095 = vpop.permute.xlu0 %1094
        %vm1100 = vcmask 458112
        %1101 = vst.msk [vmem:[#allocation5] sm:$0xff] %vm1100, %v1089
        %1102 = vst.msk [vmem:[#allocation5 + $0x8] sm:$0xff] %vm1100, %v1091
        %1103 = vst.msk [vmem:[#allocation5 + $0x10] sm:$0xff] %vm1100, %v1093
        %1104 = vst.msk [vmem:[#allocation5 + $0x18] sm:$0xff] %vm1100, %v1095
        %v1105 = vld [vmem:[%s1071 + $0x1] sm:$0xff]
        %v1106 = vld [vmem:[%s1071 + $0x11] sm:$0xff]
        %v1107 = vld [vmem:[%s1071 + $0x21] sm:$0xff]
        %v1108 = vld [vmem:[%s1071 + $0x31] sm:$0xff]
        %v1109 = vld [vmem:[%s1071 + $0x41] sm:$0xff]
        %v1110 = vld [vmem:[%s1071 + $0x51] sm:$0xff]
        %v1111 = vld [vmem:[%s1071 + $0x61] sm:$0xff]
        %v1112 = vld [vmem:[%s1071 + $0x71] sm:$0xff]
        %v1113 = vpack.c.bf16 %v1106, %v1105
        %v1114 = vpack.c.bf16 %v1108, %v1107
        %v1115 = vpack.c.bf16 %v1110, %v1109
        %v1116 = vpack.c.bf16 %v1112, %v1111
        %1121 = vrot.lane.b32.xlu0 %v1113, 56
        %v1122 = vpop.permute.xlu0 %1121
        %1123 = vrot.lane.b32.xlu0 %v1114, 56
        %v1124 = vpop.permute.xlu0 %1123
        %1125 = vrot.lane.b32.xlu0 %v1115, 56
        %v1126 = vpop.permute.xlu0 %1125
        %1127 = vrot.lane.b32.xlu0 %v1116, 56
        %v1128 = vpop.permute.xlu0 %1127
        %vm1133 = vcmask 523712
        %1134 = vst.msk [vmem:[#allocation5] sm:$0xff] %vm1133, %v1122
        %1135 = vst.msk [vmem:[#allocation5 + $0x8] sm:$0xff] %vm1133, %v1124
        %1136 = vst.msk [vmem:[#allocation5 + $0x10] sm:$0xff] %vm1133, %v1126
        %1137 = vst.msk [vmem:[#allocation5 + $0x18] sm:$0xff] %vm1133, %v1128
        %v1138 = vld [vmem:[%s1071 + $0x2] sm:$0xff]
        %v1139 = vld [vmem:[%s1071 + $0x12] sm:$0xff]
        %v1140 = vld [vmem:[%s1071 + $0x22] sm:$0xff]
        %v1141 = vld [vmem:[%s1071 + $0x32] sm:$0xff]
        %v1142 = vld [vmem:[%s1071 + $0x42] sm:$0xff]
        %v1143 = vld [vmem:[%s1071 + $0x52] sm:$0xff]
        %v1144 = vld [vmem:[%s1071 + $0x62] sm:$0xff]
        %v1145 = vld [vmem:[%s1071 + $0x72] sm:$0xff]
        %v1146 = vpack.c.bf16 %v1139, %v1138
        %v1147 = vpack.c.bf16 %v1141, %v1140
        %v1148 = vpack.c.bf16 %v1143, %v1142
        %v1149 = vpack.c.bf16 %v1145, %v1144
        %1154 = vrot.lane.b32.xlu0 %v1146, 64
        %v1155 = vpop.permute.xlu0 %1154
        %1156 = vrot.lane.b32.xlu0 %v1147, 64
        %v1157 = vpop.permute.xlu0 %1156
        %1158 = vrot.lane.b32.xlu0 %v1148, 64
        %v1159 = vpop.permute.xlu0 %1158
        %1160 = vrot.lane.b32.xlu0 %v1149, 64
        %v1161 = vpop.permute.xlu0 %1160
        %vm1166 = vcmask 589312
        %1167 = vst.msk [vmem:[#allocation5] sm:$0xff] %vm1166, %v1155
        %1168 = vst.msk [vmem:[#allocation5 + $0x8] sm:$0xff] %vm1166, %v1157
        %1169 = vst.msk [vmem:[#allocation5 + $0x10] sm:$0xff] %vm1166, %v1159
        %1170 = vst.msk [vmem:[#allocation5 + $0x18] sm:$0xff] %vm1166, %v1161
        %v1171 = vld [vmem:[#allocation5] sm:$0xff]
        %v1172 = vld [vmem:[#allocation5 + $0x8] sm:$0xff]
        %v1173 = vld [vmem:[#allocation5 + $0x10] sm:$0xff]
        %v1174 = vld [vmem:[#allocation5 + $0x18] sm:$0xff]
        %v1175 = vld [vmem:[%s4] sm:$0xf]
        %v1176 = vld [vmem:[%s4 + $0x4] sm:$0xf]
        %v1177 = vld [vmem:[%s4 + $0x8] sm:$0xf]
        %v1178 = vld [vmem:[%s4 + $0xc] sm:$0xf]
        %v1179 = vld [vmem:[%s4 + $0x10] sm:$0xf]
        %v1180 = vld [vmem:[%s4 + $0x14] sm:$0xf]
        %v1181 = vld [vmem:[%s4 + $0x18] sm:$0xf]
        %v1182 = vld [vmem:[%s4 + $0x1c] sm:$0xf]
        %v1183 = vld [vmem:[%s4 + $0x20] sm:$0xf]
        %v1193 = vunpack.c.l.b16 %v1175
        %v1194 = vunpack.c.l.b16 %v1176
        %v1195 = vunpack.c.l.b16 %v1177
        %v1196 = vunpack.c.l.b16 %v1178
        %v1197 = vunpack.c.l.b16 %v1179
        %v1198 = vunpack.c.l.b16 %v1180
        %v1199 = vunpack.c.l.b16 %v1181
        %v1200 = vunpack.c.l.b16 %v1182
        %v1201 = vunpack.c.l.b16 %v1183
        %v1202 = vpack.c.b16 %v1194, %v1193
        %v1203 = vpack.c.b16 %v1196, %v1195
        %v1204 = vpack.c.b16 %v1198, %v1197
        %v1205 = vpack.c.b16 %v1200, %v1199
        %v1206 = vpack.c.b16 %v1201, %v1201
        %vm1211 = vcmask 588800
        %v1213 = vsel %vm1211, %v1171, 0
        %v1216 = vsel %vm1211, %v1172, 0
        %v1219 = vsel %vm1211, %v1173, 0
        %v1222 = vsel %vm1211, %v1174, 0
        %vm1224 = vcmask 1043456
        %v1226 = vsel %vm1224, %v1206, 0
        %1228 = vmatprep.subr.bf16.mxu0 0
        %1229 = vmatpush1.bf16.msra.mxu0 %v1202
        %1230 = vmatprep.subr.bf16.mxu0 0
        %1231 = vmatpush1.bf16.msra.mxu0 %v1203
        %1232 = vmatprep.subr.bf16.mxu0 0
        %1233 = vmatpush1.bf16.msra.mxu0 %v1204
        %1234 = vmatprep.subr.bf16.mxu0 0
        %1235 = vmatpush1.bf16.msra.mxu0 %v1205
        %1236 = vmatprep.subr.bf16.mxu0 0
        %1237 = vmatpush1.bf16.msra.mxu0 %v1226
        %1238 = vmatprep.subr.bf16.mxu0 0
        %1239 = vmatpush1.bf16.msra.mxu0 0
        %1240 = vmatprep.subr.bf16.mxu0 0
        %1241 = vmatpush1.bf16.msra.mxu0 0
        %1242 = vmatprep.subr.bf16.mxu0 0
        %1243 = vmatpush1.bf16.msra.mxu0 0
        %1244 = vmatprep.subr.bf16.mxu0 0
        %1245 = vmatpush1.bf16.msra.mxu0 0
        %1246 = vmatprep.subr.bf16.mxu0 0
        %1247 = vmatpush1.bf16.msra.mxu0 0
        %1248 = vmatprep.subr.bf16.mxu0 0
        %1249 = vmatpush1.bf16.msra.mxu0 0
        %1250 = vmatprep.subr.bf16.mxu0 0
        %1251 = vmatpush1.bf16.msra.mxu0 0
        %1252 = vmatprep.subr.bf16.mxu0 0
        %1253 = vmatpush1.bf16.msra.mxu0 0
        %1254 = vmatprep.subr.bf16.mxu0 0
        %1255 = vmatpush1.bf16.msra.mxu0 0
        %1256 = vmatprep.subr.bf16.mxu0 0
        %1257 = vmatpush1.bf16.msra.mxu0 0
        %1258 = vmatprep.subr.bf16.mxu0 0
        %1259 = vmatpush1.bf16.msra.mxu0 0
        %1260 = vmatprep.mubr.bf16.mxu0 0
        %1261 = vmatmul.mubr.bf16.gmra.mrb[0].mxu0 %v1213
        %v1262 = vpop.f32.mrb[0].mxu0
        %v1263 = vadd.f32 0.0, %v1262
        %v1264 = vpop.f32.mrb[0].mxu0
        %v1265 = vpop.f32.mrb[0].mxu0
        %v1266 = vadd.f32 0.0, %v1265
        %v1267 = vpop.f32.mrb[0].mxu0
        %1268 = vmatprep.mubr.bf16.mxu0 0
        %1269 = vmatmul.mubr.bf16.gmra.mrb[0].mxu0 %v1216
        %v1270 = vpop.f32.mrb[0].mxu0
        %v1271 = vadd.f32 0.0, %v1270
        %v1272 = vpop.f32.mrb[0].mxu0
        %v1273 = vpop.f32.mrb[0].mxu0
        %v1274 = vadd.f32 0.0, %v1273
        %v1275 = vpop.f32.mrb[0].mxu0
        %1276 = vmatprep.mubr.bf16.mxu0 0
        %1277 = vmatmul.mubr.bf16.gmra.mrb[0].mxu0 %v1219
        %v1278 = vpop.f32.mrb[0].mxu0
        %v1279 = vadd.f32 0.0, %v1278
        %v1280 = vpop.f32.mrb[0].mxu0
        %v1281 = vpop.f32.mrb[0].mxu0
        %v1282 = vadd.f32 0.0, %v1281
        %v1283 = vpop.f32.mrb[0].mxu0
        %1284 = vmatprep.mubr.bf16.mxu0 0
        %1285 = vmatmul.mubr.bf16.gmra.mrb[0].mxu0 %v1222
        %v1286 = vpop.f32.mrb[0].mxu0
        %v1287 = vadd.f32 0.0, %v1286
        %v1288 = vpop.f32.mrb[0].mxu0
        %v1289 = vpop.f32.mrb[0].mxu0
        %v1290 = vadd.f32 0.0, %v1289
        %v1291 = vpop.f32.mrb[0].mxu0
        %1292 = vdwg.mxu0
        %v1293 = vld [vmem:[%s5] sm:$0x1]
        %v1295 = vlaneseq
        %v1296 = vshrl.u32 %v1295, 7
        %v1297 = vsub.s32 0, %v1296
        %v1298 = vrot.slane %v1293, %v1297
        %v1300 = vmul.f32 %v1263, %v1298
        %v1301 = vmul.f32 %v1266, %v1298
        %v1302 = vmul.f32 %v1271, %v1298
        %v1303 = vmul.f32 %v1274, %v1298
        %v1304 = vmul.f32 %v1279, %v1298
        %v1305 = vmul.f32 %v1282, %v1298
        %v1306 = vmul.f32 %v1287, %v1298
        %v1307 = vmul.f32 %v1290, %v1298
        %v1308 = vld [vmem:[%s6] sm:$0x1]
        %v1310 = vlaneseq
        %v1311 = vshrl.u32 %v1310, 7
        %v1312 = vsub.s32 0, %v1311
        %v1313 = vrot.slane %v1308, %v1312
        %v1315 = vadd.f32 %v1300, %v1313
        %v1316 = vadd.f32 %v1301, %v1313
        %v1317 = vadd.f32 %v1302, %v1313
        %v1318 = vadd.f32 %v1303, %v1313
        %v1319 = vadd.f32 %v1304, %v1313
        %v1320 = vadd.f32 %v1305, %v1313
        %v1321 = vadd.f32 %v1306, %v1313
        %v1322 = vadd.f32 %v1307, %v1313
        %v1323 = vmax.f32 %v1315, 0.0
        %v1324 = vmax.f32 %v1316, 0.0
        %v1325 = vmax.f32 %v1317, 0.0
        %v1326 = vmax.f32 %v1318, 0.0
        %v1327 = vmax.f32 %v1319, 0.0
        %v1328 = vmax.f32 %v1320, 0.0
        %v1329 = vmax.f32 %v1321, 0.0
        %v1330 = vmax.f32 %v1322, 0.0
        %1331 = vst.msk [vmem:[%s296] sm:$0xff] %vm859, %v1323
        %1332 = vst.msk [vmem:[%s296 + $0x8] sm:$0xff] %vm859, %v1324
        %1333 = vst.msk [vmem:[%s296 + $0x10] sm:$0xff] %vm859, %v1325
        %1334 = vst.msk [vmem:[%s296 + $0x18] sm:$0xff] %vm859, %v1326
        %1335 = vst.msk [vmem:[%s296 + $0x20] sm:$0xff] %vm859, %v1327
        %1336 = vst.msk [vmem:[%s296 + $0x28] sm:$0xff] %vm859, %v1328
        %1337 = vst.msk [vmem:[%s296 + $0x30] sm:$0xff] %vm859, %v1329
        %1338 = vst.msk [vmem:[%s296 + $0x38] sm:$0xff] %vm859, %v1330
        %s1339 = sand.u32 %s184, 1
        %s1340 = scalar_lea.sflag [#allocation8], %s1339
        %s1341 = sand.u32 %s184, 1
        %s1342 = smul.addr %s1341, 64
        %s1343 = scalar_lea.vmem [#allocation9], %s1342
        // Predicated region
        $region53: #{tpu_custom_call.1} parent=47 // pred_check
          %p1344 = pneg %p194
        $region54: #{tpu_custom_call.1} parent=47 // pred_check_branch
          %1346 = sbr.rel (%p1344) target = $region56
        $region55: #{tpu_custom_call.1} parent=47 // pred_region
          %s1348 = ssub.s32 1024, 1024
          %1349 = vsyncadd %s1340, %s1348
          %s1350 = smul.addr %s24, 8
          %s1351 = smul.addr %s1350, 128
          %s1352 = scalar_lea.hbm %s7, %s1351
          %s1353 = sshll.u32 %s1343, 4
          %s1354 = int_to_ptr.vmem [resolvable:$true] %s1353
          %1359 = dma.vmem_to_hbm [thread:$0]  %s1354, 1024, %s1352, %s1340, 128, 128, 8
        $region56: #{tpu_custom_call.1} parent=47 // pred_fallthru
          _
      $region48: #{tpu_custom_call.1} parent=5 // pred_fallthru
        _
      %p1360 = scmp.le.s32.totalorder 2, %s19
      // Predicated region
      $region57: #{tpu_custom_call.1} parent=5 // pred_check
        %p1361 = pneg %p1360
      $region58: #{tpu_custom_call.1} parent=5 // pred_check_branch
        %1363 = sbr.rel (%p1361) target = $region60
      $region59: #{tpu_custom_call.1} parent=5 // pred_region
        %s1364 = ssub.s32 %s19, 2
        // Predicated region
        $region61: #{tpu_custom_call.1} parent=59 // pred_check
          %p1365 = pneg %p200
        $region62: #{tpu_custom_call.1} parent=59 // pred_check_branch
          %1367 = sbr.rel (%p1365) target = $region64
        $region63: #{tpu_custom_call.1} parent=59 // pred_region
          %s1368 = sand.u32 %s185, 1
          %s1369 = scalar_lea.sflag [#allocation8], %s1368
          %s1370 = sand.u32 %s185, 1
          %s1371 = smul.addr %s1370, 64
          %s1372 = scalar_lea.vmem [#allocation9], %s1371
          %1373 = dma.done %s1369, 1024
        $region64: #{tpu_custom_call.1} parent=59 // pred_fallthru
          _
      $region60: #{tpu_custom_call.1} parent=5 // pred_fallthru
        _
    $region6: #{tpu_custom_call.1} parent=1 // loop_footer
      %s23 = sadd.s32 1, %s19
    $region7: #{tpu_custom_call.1} parent=1 // loop_footer_branch
      %18 = sbr.rel target = $region3
    $region8: #{tpu_custom_call.1} parent=1 // loop_exit
      _
    %1374 = vsyncpa [#allocation7], 1
    %s1375 = scalar_lea.sflag [#allocation7], 1
    %1376 = vsyncpa %s1375, 1
    %1377 = vsyncpa [#allocation8], 1
    %s1378 = scalar_lea.sflag [#allocation8], 1
    %1379 = vsyncpa %s1378, 1

</llo_original>
